<compile_context>
chip_gen: v7x
topology: tpu7x:2x2x1
jax: 0.10.0
libtpu: 0.0.40
codegen_flags: <defaults>
</compile_context>

<pallas_src>
import jax
import jax.numpy as jnp
from jax.experimental import pallas as pl
from jax.experimental.pallas import tpu as pltpu

HIDDEN = 256
MIN_SUBLANE = 8          # f32 sublane granularity
DEFAULT_BLOCK_B = 2048   # max batch rows per grid step


def _round_up(n, m):
    return ((n + m - 1) // m) * m


def qnet_kernel(x_ref,
                w1_ref, b1_ref,
                w2_ref, b2_ref,
                w3_ref, b3_ref,
                w4_ref, b4_ref,
                w5_ref, b5_ref,
                o_ref):
    # All five matmuls + ReLUs fused in one kernel body.
    # Matmul operands are in the weight dtype (f32 or bf16); accumulation is
    # always f32; bias add / ReLU run in f32 (v5e VPU has no bf16 arithmetic),
    # then the activation is cast back to the weight dtype so the live
    # inter-layer tensor is narrow.
    wdt = w1_ref.dtype

    def layer(h, w_ref, b_ref, relu):
        y = jnp.dot(h, w_ref[...], preferred_element_type=jnp.float32) + b_ref[...]
        if relu:
            y = jnp.maximum(y, 0.0).astype(wdt)
        return y

    h = x_ref[...].astype(wdt)
    h = layer(h, w1_ref, b1_ref, True)
    h = layer(h, w2_ref, b2_ref, True)
    h = layer(h, w3_ref, b3_ref, True)
    h = layer(h, w4_ref, b4_ref, True)
    out = layer(h, w5_ref, b5_ref, False)
    o_ref[...] = out.astype(o_ref.dtype)


def qnet_forward(x, params, *, block_b=DEFAULT_BLOCK_B,
                 weight_dtype=jnp.bfloat16,
                 min_grid_steps=2,
                 single_buffer_weights=True):
    """x: (B, state_size) f32.  params: list of (W, b) with W laid out (in, out)."""
    batch, state_size = x.shape
    action_size = params[-1][0].shape[1]
    # Pad final layer only to the sublane granularity (8), not 128 lanes:
    # block == full last dim so it is legal, and output writeback shrinks ~16x.
    out_pad = max(_round_up(action_size, MIN_SUBLANE), MIN_SUBLANE)

    # ---- adaptive batch tiling --------------------------------------------
    batch8 = _round_up(batch, MIN_SUBLANE)
    n_steps = pl.cdiv(batch8, block_b)
    if batch8 >= 2 * MIN_SUBLANE:
        # keep >= 2 grid steps so both v7x TensorCores get work
        n_steps = max(n_steps, min_grid_steps)
    tb = _round_up(pl.cdiv(batch8, n_steps), MIN_SUBLANE)
    batch_p = _round_up(batch8, tb)
    if batch_p != batch:
        x = jnp.pad(x, ((0, batch_p - batch), (0, 0)))
    grid = (batch_p // tb,)

    # ---- build + run the fused kernel -------------------------------------
    def build_and_call(single_buf):
        weight_spec_kwargs = {}
        if single_buf:
            # constant index_map -> second pipeline buffer is dead weight
            weight_spec_kwargs = dict(pipeline_mode=pl.Buffered(1))

        flat_args = [x]
        in_specs = [pl.BlockSpec((tb, state_size), lambda i: (i, 0))]
        for li, (w, b) in enumerate(params):
            if li == len(params) - 1 and w.shape[1] != out_pad:
                # zero-pad final layer columns (padded cols stay exactly 0+bias-pad=0)
                w = jnp.pad(w, ((0, 0), (0, out_pad - action_size)))
                b = jnp.pad(b, (0, out_pad - action_size))
            w = w.astype(weight_dtype)
            b2d = b.reshape(1, -1).astype(jnp.float32)
            flat_args.append(w)
            in_specs.append(
                pl.BlockSpec(w.shape, lambda i: (0, 0), **weight_spec_kwargs))
            flat_args.append(b2d)
            in_specs.append(
                pl.BlockSpec(b2d.shape, lambda i: (0, 0), **weight_spec_kwargs))

        call = pl.pallas_call(
            qnet_kernel,
            out_shape=jax.ShapeDtypeStruct((batch_p, out_pad), jnp.float32),
            grid=grid,
            in_specs=in_specs,
            out_specs=pl.BlockSpec((tb, out_pad), lambda i: (i, 0)),
            compiler_params=pltpu.CompilerParams(
                dimension_semantics=("parallel",),   # shard batch tiles over TCs
                vmem_limit_bytes=32 * 1024 * 1024,   # v5e: raise 16 MiB default
            ),
        )
        return call(*flat_args)

    if single_buffer_weights:
        try:
            out = build_and_call(True)
        except Exception:
            # pipeline_mode / Buffered(1) unsupported on this JAX build:
            # fall back to default double-buffered resident weights.
            out = build_and_call(False)
    else:
        out = build_and_call(False)

    # strip batch padding and lane padding (layout plumbing, not compute)
    return out[:batch, :action_size]


def init_linear(key, fan_in, fan_out):
    """Deterministic PyTorch-style init: U(-1/sqrt(fan_in), 1/sqrt(fan_in))."""
    kw, kb = jax.random.split(key)
    bound = 1.0 / jnp.sqrt(float(fan_in))
    # Stored as (in, out) == transposed PyTorch layout.
    w = jax.random.uniform(kw, (fan_in, fan_out), jnp.float32, -bound, bound)
    b = jax.random.uniform(kb, (fan_out,), jnp.float32, -bound, bound)
    return w, b


def make_params(key, state_size, action_size):
    dims = [state_size, HIDDEN, HIDDEN, HIDDEN, HIDDEN, action_size]
    keys = jax.random.split(key, len(dims) - 1)
    return [init_linear(k, dims[i], dims[i + 1]) for i, k in enumerate(keys)]


def reference_forward(x, params):
    h = x
    for i, (w, b) in enumerate(params):
        h = h @ w + b
        if i < len(params) - 1:
            h = jnp.maximum(h, 0.0)
    return h


if __name__ == "__main__":
    key = jax.random.PRNGKey(0)
    k_params, k_x, k_x2 = jax.random.split(key, 3)

    state_size = 32    # snake game state vector
    action_size = 4    # up / down / left / right
    params = make_params(k_params, state_size, action_size)

    # --- small per-step RL batch: single grid step, tb = 8, f32 exactness ---
    batch = 8
    x = jax.random.normal(k_x, (batch, state_size), jnp.float32)
    out = jax.block_until_ready(
        qnet_forward(x, params, weight_dtype=jnp.float32))
    ref = reference_forward(x, params)
    assert out.shape == (batch, action_size)
    assert jnp.allclose(out, ref, atol=1e-4, rtol=1e-4), "f32 mismatch vs reference"

    # --- ragged larger batch, f32 weights: adaptive tile -> grid=(2,), tb=504 ---
    big_batch = 1000
    xb = jax.random.normal(k_x2, (big_batch, state_size), jnp.float32)
    out_big = jax.block_until_ready(
        qnet_forward(xb, params, weight_dtype=jnp.float32))
    ref_big = reference_forward(xb, params)
    assert out_big.shape == (big_batch, action_size)
    assert jnp.allclose(out_big, ref_big, atol=1e-4, rtol=1e-4), "tiled f32 mismatch"

    # --- default bf16-weight / bf16-activation path, f32 accumulation ---
    out_bf16 = jax.block_until_ready(qnet_forward(xb, params))
    assert out_bf16.shape == (big_batch, action_size)
    assert jnp.allclose(out_bf16, ref_big, atol=1e-1, rtol=1e-1), "bf16 mismatch"

    print("KERNEL_OK")
</pallas_src>

<mosaic_0001>
module attributes {stable_mosaic.version = 11 : i64} {
  func.func @qnet_kernel(%arg0: i32, %arg1: memref<8x32xf32, #tpu.memory_space<vmem>>, %arg2: memref<32x256xf32, #tpu.memory_space<vmem>>, %arg3: memref<1x256xf32, #tpu.memory_space<vmem>>, %arg4: memref<256x256xf32, #tpu.memory_space<vmem>>, %arg5: memref<1x256xf32, #tpu.memory_space<vmem>>, %arg6: memref<256x256xf32, #tpu.memory_space<vmem>>, %arg7: memref<1x256xf32, #tpu.memory_space<vmem>>, %arg8: memref<256x256xf32, #tpu.memory_space<vmem>>, %arg9: memref<1x256xf32, #tpu.memory_space<vmem>>, %arg10: memref<256x8xf32, #tpu.memory_space<vmem>>, %arg11: memref<1x8xf32, #tpu.memory_space<vmem>>, %arg12: memref<8x8xf32, #tpu.memory_space<vmem>>) attributes {dimension_semantics = [#tpu.dimension_semantics<parallel>], iteration_bounds = array<i64: 1>, scalar_prefetch = 0 : i64, scratch_operands = 0 : i64, tpu.core_type = #tpu.core_type<tc>, window_params = [{transform_indices = @transform_0, window_bounds = array<i64: 8, 32>}, {pipeline_mode = #tpu.pipeline_mode<synchronous>, transform_indices = @transform_1, window_bounds = array<i64: 32, 256>}, {pipeline_mode = #tpu.pipeline_mode<synchronous>, transform_indices = @transform_2, window_bounds = array<i64: 1, 256>}, {pipeline_mode = #tpu.pipeline_mode<synchronous>, transform_indices = @transform_3, window_bounds = array<i64: 256, 256>}, {pipeline_mode = #tpu.pipeline_mode<synchronous>, transform_indices = @transform_4, window_bounds = array<i64: 1, 256>}, {pipeline_mode = #tpu.pipeline_mode<synchronous>, transform_indices = @transform_5, window_bounds = array<i64: 256, 256>}, {pipeline_mode = #tpu.pipeline_mode<synchronous>, transform_indices = @transform_6, window_bounds = array<i64: 1, 256>}, {pipeline_mode = #tpu.pipeline_mode<synchronous>, transform_indices = @transform_7, window_bounds = array<i64: 256, 256>}, {pipeline_mode = #tpu.pipeline_mode<synchronous>, transform_indices = @transform_8, window_bounds = array<i64: 1, 256>}, {pipeline_mode = #tpu.pipeline_mode<synchronous>, transform_indices = @transform_9, window_bounds = array<i64: 256, 8>}, {pipeline_mode = #tpu.pipeline_mode<synchronous>, transform_indices = @transform_10, window_bounds = array<i64: 1, 8>}, {transform_indices = @transform_11, window_bounds = array<i64: 8, 8>}]} {
    %c0 = arith.constant 0 : index
    %c0_0 = arith.constant 0 : index
    %0 = vector.load %arg1[%c0, %c0_0] : memref<8x32xf32, #tpu.memory_space<vmem>>, vector<8x32xf32>
    %c0_1 = arith.constant 0 : index
    %c0_2 = arith.constant 0 : index
    %1 = vector.load %arg2[%c0_1, %c0_2] : memref<32x256xf32, #tpu.memory_space<vmem>>, vector<32x256xf32>
    %cst = arith.constant dense<0.000000e+00> : vector<8x256xf32>
    %2 = tpu.matmul %0, %1, %cst {dimension_numbers = #tpu.dot_dimension_numbers<[1], [0], [0], [1], [0, 0, 1, 1], [], []>} : vector<8x32xf32>, vector<32x256xf32>, vector<8x256xf32> -> vector<8x256xf32>
    %c0_3 = arith.constant 0 : index
    %c0_4 = arith.constant 0 : index
    %3 = vector.load %arg3[%c0_3, %c0_4] : memref<1x256xf32, #tpu.memory_space<vmem>>, vector<1x256xf32>
    %4 = vector.broadcast %3 : vector<1x256xf32> to vector<8x256xf32>
    %5 = arith.addf %2, %4 : vector<8x256xf32>
    %cst_5 = arith.constant 0.000000e+00 : f32
    %6 = vector.broadcast %cst_5 : f32 to vector<8x256xf32>
    %7 = arith.maximumf %5, %6 : vector<8x256xf32>
    %c0_6 = arith.constant 0 : index
    %c0_7 = arith.constant 0 : index
    %8 = vector.load %arg4[%c0_6, %c0_7] : memref<256x256xf32, #tpu.memory_space<vmem>>, vector<256x256xf32>
    %cst_8 = arith.constant dense<0.000000e+00> : vector<8x256xf32>
    %9 = tpu.matmul %7, %8, %cst_8 {dimension_numbers = #tpu.dot_dimension_numbers<[1], [0], [0], [1], [0, 0, 1, 1], [], []>} : vector<8x256xf32>, vector<256x256xf32>, vector<8x256xf32> -> vector<8x256xf32>
    %c0_9 = arith.constant 0 : index
    %c0_10 = arith.constant 0 : index
    %10 = vector.load %arg5[%c0_9, %c0_10] : memref<1x256xf32, #tpu.memory_space<vmem>>, vector<1x256xf32>
    %11 = vector.broadcast %10 : vector<1x256xf32> to vector<8x256xf32>
    %12 = arith.addf %9, %11 : vector<8x256xf32>
    %cst_11 = arith.constant 0.000000e+00 : f32
    %13 = vector.broadcast %cst_11 : f32 to vector<8x256xf32>
    %14 = arith.maximumf %12, %13 : vector<8x256xf32>
    %c0_12 = arith.constant 0 : index
    %c0_13 = arith.constant 0 : index
    %15 = vector.load %arg6[%c0_12, %c0_13] : memref<256x256xf32, #tpu.memory_space<vmem>>, vector<256x256xf32>
    %cst_14 = arith.constant dense<0.000000e+00> : vector<8x256xf32>
    %16 = tpu.matmul %14, %15, %cst_14 {dimension_numbers = #tpu.dot_dimension_numbers<[1], [0], [0], [1], [0, 0, 1, 1], [], []>} : vector<8x256xf32>, vector<256x256xf32>, vector<8x256xf32> -> vector<8x256xf32>
    %c0_15 = arith.constant 0 : index
    %c0_16 = arith.constant 0 : index
    %17 = vector.load %arg7[%c0_15, %c0_16] : memref<1x256xf32, #tpu.memory_space<vmem>>, vector<1x256xf32>
    %18 = vector.broadcast %17 : vector<1x256xf32> to vector<8x256xf32>
    %19 = arith.addf %16, %18 : vector<8x256xf32>
    %cst_17 = arith.constant 0.000000e+00 : f32
    %20 = vector.broadcast %cst_17 : f32 to vector<8x256xf32>
    %21 = arith.maximumf %19, %20 : vector<8x256xf32>
    %c0_18 = arith.constant 0 : index
    %c0_19 = arith.constant 0 : index
    %22 = vector.load %arg8[%c0_18, %c0_19] : memref<256x256xf32, #tpu.memory_space<vmem>>, vector<256x256xf32>
    %cst_20 = arith.constant dense<0.000000e+00> : vector<8x256xf32>
    %23 = tpu.matmul %21, %22, %cst_20 {dimension_numbers = #tpu.dot_dimension_numbers<[1], [0], [0], [1], [0, 0, 1, 1], [], []>} : vector<8x256xf32>, vector<256x256xf32>, vector<8x256xf32> -> vector<8x256xf32>
    %c0_21 = arith.constant 0 : index
    %c0_22 = arith.constant 0 : index
    %24 = vector.load %arg9[%c0_21, %c0_22] : memref<1x256xf32, #tpu.memory_space<vmem>>, vector<1x256xf32>
    %25 = vector.broadcast %24 : vector<1x256xf32> to vector<8x256xf32>
    %26 = arith.addf %23, %25 : vector<8x256xf32>
    %cst_23 = arith.constant 0.000000e+00 : f32
    %27 = vector.broadcast %cst_23 : f32 to vector<8x256xf32>
    %28 = arith.maximumf %26, %27 : vector<8x256xf32>
    %c0_24 = arith.constant 0 : index
    %c0_25 = arith.constant 0 : index
    %29 = vector.load %arg10[%c0_24, %c0_25] : memref<256x8xf32, #tpu.memory_space<vmem>>, vector<256x8xf32>
    %cst_26 = arith.constant dense<0.000000e+00> : vector<8x8xf32>
    %30 = tpu.matmul %28, %29, %cst_26 {dimension_numbers = #tpu.dot_dimension_numbers<[1], [0], [0], [1], [0, 0, 1, 1], [], []>} : vector<8x256xf32>, vector<256x8xf32>, vector<8x8xf32> -> vector<8x8xf32>
    %c0_27 = arith.constant 0 : index
    %c0_28 = arith.constant 0 : index
    %31 = vector.load %arg11[%c0_27, %c0_28] : memref<1x8xf32, #tpu.memory_space<vmem>>, vector<1x8xf32>
    %32 = vector.broadcast %31 : vector<1x8xf32> to vector<8x8xf32>
    %33 = arith.addf %30, %32 : vector<8x8xf32>
    %c0_29 = arith.constant 0 : index
    %c0_30 = arith.constant 0 : index
    %34 = vector.load %arg12[%c0_29, %c0_30] : memref<8x8xf32, #tpu.memory_space<vmem>>, vector<8x8xf32>
    tpu.vector_store %arg12[%c0_29, %c0_30], %33 {strides = array<i32>} : memref<8x8xf32, #tpu.memory_space<vmem>>, vector<8x8xf32>,
    return
  }
  func.func @transform_0(%arg0: i32) -> (i32, i32) {
    %c0_i32 = arith.constant 0 : i32
    %c0_i32_0 = arith.constant 0 : i32
    return %arg0, %c0_i32 : i32, i32
  }
  func.func @transform_1(%arg0: i32) -> (i32, i32) {
    %c0_i32 = arith.constant 0 : i32
    %c0_i32_0 = arith.constant 0 : i32
    %c0_i32_1 = arith.constant 0 : i32
    return %c0_i32, %c0_i32_0 : i32, i32
  }
  func.func @transform_2(%arg0: i32) -> (i32, i32) {
    %c0_i32 = arith.constant 0 : i32
    %c0_i32_0 = arith.constant 0 : i32
    %c0_i32_1 = arith.constant 0 : i32
    return %c0_i32, %c0_i32_0 : i32, i32
  }
  func.func @transform_3(%arg0: i32) -> (i32, i32) {
    %c0_i32 = arith.constant 0 : i32
    %c0_i32_0 = arith.constant 0 : i32
    %c0_i32_1 = arith.constant 0 : i32
    return %c0_i32, %c0_i32_0 : i32, i32
  }
  func.func @transform_4(%arg0: i32) -> (i32, i32) {
    %c0_i32 = arith.constant 0 : i32
    %c0_i32_0 = arith.constant 0 : i32
    %c0_i32_1 = arith.constant 0 : i32
    return %c0_i32, %c0_i32_0 : i32, i32
  }
  func.func @transform_5(%arg0: i32) -> (i32, i32) {
    %c0_i32 = arith.constant 0 : i32
    %c0_i32_0 = arith.constant 0 : i32
    %c0_i32_1 = arith.constant 0 : i32
    return %c0_i32, %c0_i32_0 : i32, i32
  }
  func.func @transform_6(%arg0: i32) -> (i32, i32) {
    %c0_i32 = arith.constant 0 : i32
    %c0_i32_0 = arith.constant 0 : i32
    %c0_i32_1 = arith.constant 0 : i32
    return %c0_i32, %c0_i32_0 : i32, i32
  }
  func.func @transform_7(%arg0: i32) -> (i32, i32) {
    %c0_i32 = arith.constant 0 : i32
    %c0_i32_0 = arith.constant 0 : i32
    %c0_i32_1 = arith.constant 0 : i32
    return %c0_i32, %c0_i32_0 : i32, i32
  }
  func.func @transform_8(%arg0: i32) -> (i32, i32) {
    %c0_i32 = arith.constant 0 : i32
    %c0_i32_0 = arith.constant 0 : i32
    %c0_i32_1 = arith.constant 0 : i32
    return %c0_i32, %c0_i32_0 : i32, i32
  }
  func.func @transform_9(%arg0: i32) -> (i32, i32) {
    %c0_i32 = arith.constant 0 : i32
    %c0_i32_0 = arith.constant 0 : i32
    %c0_i32_1 = arith.constant 0 : i32
    return %c0_i32, %c0_i32_0 : i32, i32
  }
  func.func @transform_10(%arg0: i32) -> (i32, i32) {
    %c0_i32 = arith.constant 0 : i32
    %c0_i32_0 = arith.constant 0 : i32
    %c0_i32_1 = arith.constant 0 : i32
    return %c0_i32, %c0_i32_0 : i32, i32
  }
  func.func @transform_11(%arg0: i32) -> (i32, i32) {
    %c0_i32 = arith.constant 0 : i32
    %c0_i32_0 = arith.constant 0 : i32
    return %arg0, %c0_i32 : i32, i32
  }
}

module attributes {stable_mosaic.version = 11 : i64} {
  func.func @qnet_kernel(%arg0: i32, %arg1: memref<8x32xf32, #tpu.memory_space<vmem>>, %arg2: memref<32x256xf32, #tpu.memory_space<vmem>>, %arg3: memref<1x256xf32, #tpu.memory_space<vmem>>, %arg4: memref<256x256xf32, #tpu.memory_space<vmem>>, %arg5: memref<1x256xf32, #tpu.memory_space<vmem>>, %arg6: memref<256x256xf32, #tpu.memory_space<vmem>>, %arg7: memref<1x256xf32, #tpu.memory_space<vmem>>, %arg8: memref<256x256xf32, #tpu.memory_space<vmem>>, %arg9: memref<1x256xf32, #tpu.memory_space<vmem>>, %arg10: memref<256x8xf32, #tpu.memory_space<vmem>>, %arg11: memref<1x8xf32, #tpu.memory_space<vmem>>, %arg12: memref<8x8xf32, #tpu.memory_space<vmem>>) attributes {dimension_semantics = [#tpu.dimension_semantics<parallel>], iteration_bounds = array<i64: 1>, scalar_prefetch = 0 : i64, scratch_operands = 0 : i64, tpu.core_type = #tpu.core_type<tc>, window_params = [{transform_indices = @transform_0, window_bounds = array<i64: 8, 32>}, {pipeline_mode = #tpu.pipeline_mode<synchronous>, transform_indices = @transform_1, window_bounds = array<i64: 32, 256>}, {pipeline_mode = #tpu.pipeline_mode<synchronous>, transform_indices = @transform_2, window_bounds = array<i64: 1, 256>}, {pipeline_mode = #tpu.pipeline_mode<synchronous>, transform_indices = @transform_3, window_bounds = array<i64: 256, 256>}, {pipeline_mode = #tpu.pipeline_mode<synchronous>, transform_indices = @transform_4, window_bounds = array<i64: 1, 256>}, {pipeline_mode = #tpu.pipeline_mode<synchronous>, transform_indices = @transform_5, window_bounds = array<i64: 256, 256>}, {pipeline_mode = #tpu.pipeline_mode<synchronous>, transform_indices = @transform_6, window_bounds = array<i64: 1, 256>}, {pipeline_mode = #tpu.pipeline_mode<synchronous>, transform_indices = @transform_7, window_bounds = array<i64: 256, 256>}, {pipeline_mode = #tpu.pipeline_mode<synchronous>, transform_indices = @transform_8, window_bounds = array<i64: 1, 256>}, {pipeline_mode = #tpu.pipeline_mode<synchronous>, transform_indices = @transform_9, window_bounds = array<i64: 256, 8>}, {pipeline_mode = #tpu.pipeline_mode<synchronous>, transform_indices = @transform_10, window_bounds = array<i64: 1, 8>}, {transform_indices = @transform_11, window_bounds = array<i64: 8, 8>}]} {
    %c0 = arith.constant 0 : index
    %c0_0 = arith.constant 0 : index
    %0 = vector.load %arg1[%c0, %c0_0] : memref<8x32xf32, #tpu.memory_space<vmem>>, vector<8x32xf32>
    %c0_1 = arith.constant 0 : index
    %c0_2 = arith.constant 0 : index
    %1 = vector.load %arg2[%c0_1, %c0_2] : memref<32x256xf32, #tpu.memory_space<vmem>>, vector<32x256xf32>
    %cst = arith.constant dense<0.000000e+00> : vector<8x256xf32>
    %2 = tpu.matmul %0, %1, %cst {dimension_numbers = #tpu.dot_dimension_numbers<[1], [0], [0], [1], [0, 0, 1, 1], [], []>} : vector<8x32xf32>, vector<32x256xf32>, vector<8x256xf32> -> vector<8x256xf32>
    %c0_3 = arith.constant 0 : index
    %c0_4 = arith.constant 0 : index
    %3 = vector.load %arg3[%c0_3, %c0_4] : memref<1x256xf32, #tpu.memory_space<vmem>>, vector<1x256xf32>
    %4 = vector.broadcast %3 : vector<1x256xf32> to vector<8x256xf32>
    %5 = arith.addf %2, %4 : vector<8x256xf32>
    %cst_5 = arith.constant 0.000000e+00 : f32
    %6 = vector.broadcast %cst_5 : f32 to vector<8x256xf32>
    %7 = arith.maximumf %5, %6 : vector<8x256xf32>
    %c0_6 = arith.constant 0 : index
    %c0_7 = arith.constant 0 : index
    %8 = vector.load %arg4[%c0_6, %c0_7] : memref<256x256xf32, #tpu.memory_space<vmem>>, vector<256x256xf32>
    %cst_8 = arith.constant dense<0.000000e+00> : vector<8x256xf32>
    %9 = tpu.matmul %7, %8, %cst_8 {dimension_numbers = #tpu.dot_dimension_numbers<[1], [0], [0], [1], [0, 0, 1, 1], [], []>} : vector<8x256xf32>, vector<256x256xf32>, vector<8x256xf32> -> vector<8x256xf32>
    %c0_9 = arith.constant 0 : index
    %c0_10 = arith.constant 0 : index
    %10 = vector.load %arg5[%c0_9, %c0_10] : memref<1x256xf32, #tpu.memory_space<vmem>>, vector<1x256xf32>
    %11 = vector.broadcast %10 : vector<1x256xf32> to vector<8x256xf32>
    %12 = arith.addf %9, %11 : vector<8x256xf32>
    %cst_11 = arith.constant 0.000000e+00 : f32
    %13 = vector.broadcast %cst_11 : f32 to vector<8x256xf32>
    %14 = arith.maximumf %12, %13 : vector<8x256xf32>
    %c0_12 = arith.constant 0 : index
    %c0_13 = arith.constant 0 : index
    %15 = vector.load %arg6[%c0_12, %c0_13] : memref<256x256xf32, #tpu.memory_space<vmem>>, vector<256x256xf32>
    %cst_14 = arith.constant dense<0.000000e+00> : vector<8x256xf32>
    %16 = tpu.matmul %14, %15, %cst_14 {dimension_numbers = #tpu.dot_dimension_numbers<[1], [0], [0], [1], [0, 0, 1, 1], [], []>} : vector<8x256xf32>, vector<256x256xf32>, vector<8x256xf32> -> vector<8x256xf32>
    %c0_15 = arith.constant 0 : index
    %c0_16 = arith.constant 0 : index
    %17 = vector.load %arg7[%c0_15, %c0_16] : memref<1x256xf32, #tpu.memory_space<vmem>>, vector<1x256xf32>
    %18 = vector.broadcast %17 : vector<1x256xf32> to vector<8x256xf32>
    %19 = arith.addf %16, %18 : vector<8x256xf32>
    %cst_17 = arith.constant 0.000000e+00 : f32
    %20 = vector.broadcast %cst_17 : f32 to vector<8x256xf32>
    %21 = arith.maximumf %19, %20 : vector<8x256xf32>
    %c0_18 = arith.constant 0 : index
    %c0_19 = arith.constant 0 : index
    %22 = vector.load %arg8[%c0_18, %c0_19] : memref<256x256xf32, #tpu.memory_space<vmem>>, vector<256x256xf32>
    %cst_20 = arith.constant dense<0.000000e+00> : vector<8x256xf32>
    %23 = tpu.matmul %21, %22, %cst_20 {dimension_numbers = #tpu.dot_dimension_numbers<[1], [0], [0], [1], [0, 0, 1, 1], [], []>} : vector<8x256xf32>, vector<256x256xf32>, vector<8x256xf32> -> vector<8x256xf32>
    %c0_21 = arith.constant 0 : index
    %c0_22 = arith.constant 0 : index
    %24 = vector.load %arg9[%c0_21, %c0_22] : memref<1x256xf32, #tpu.memory_space<vmem>>, vector<1x256xf32>
    %25 = vector.broadcast %24 : vector<1x256xf32> to vector<8x256xf32>
    %26 = arith.addf %23, %25 : vector<8x256xf32>
    %cst_23 = arith.constant 0.000000e+00 : f32
    %27 = vector.broadcast %cst_23 : f32 to vector<8x256xf32>
    %28 = arith.maximumf %26, %27 : vector<8x256xf32>
    %c0_24 = arith.constant 0 : index
    %c0_25 = arith.constant 0 : index
    %29 = vector.load %arg10[%c0_24, %c0_25] : memref<256x8xf32, #tpu.memory_space<vmem>>, vector<256x8xf32>
    %cst_26 = arith.constant dense<0.000000e+00> : vector<8x8xf32>
    %30 = tpu.matmul %28, %29, %cst_26 {dimension_numbers = #tpu.dot_dimension_numbers<[1], [0], [0], [1], [0, 0, 1, 1], [], []>} : vector<8x256xf32>, vector<256x8xf32>, vector<8x8xf32> -> vector<8x8xf32>
    %c0_27 = arith.constant 0 : index
    %c0_28 = arith.constant 0 : index
    %31 = vector.load %arg11[%c0_27, %c0_28] : memref<1x8xf32, #tpu.memory_space<vmem>>, vector<1x8xf32>
    %32 = vector.broadcast %31 : vector<1x8xf32> to vector<8x8xf32>
    %33 = arith.addf %30, %32 : vector<8x8xf32>
    %c0_29 = arith.constant 0 : index
    %c0_30 = arith.constant 0 : index
    %34 = vector.load %arg12[%c0_29, %c0_30] : memref<8x8xf32, #tpu.memory_space<vmem>>, vector<8x8xf32>
    tpu.vector_store %arg12[%c0_29, %c0_30], %33 {strides = array<i32>} : memref<8x8xf32, #tpu.memory_space<vmem>>, vector<8x8xf32>,
    return
  }
  func.func @transform_0(%arg0: i32) -> (i32, i32) {
    %c0_i32 = arith.constant 0 : i32
    %c0_i32_0 = arith.constant 0 : i32
    return %arg0, %c0_i32 : i32, i32
  }
  func.func @transform_1(%arg0: i32) -> (i32, i32) {
    %c0_i32 = arith.constant 0 : i32
    %c0_i32_0 = arith.constant 0 : i32
    %c0_i32_1 = arith.constant 0 : i32
    return %c0_i32, %c0_i32_0 : i32, i32
  }
  func.func @transform_2(%arg0: i32) -> (i32, i32) {
    %c0_i32 = arith.constant 0 : i32
    %c0_i32_0 = arith.constant 0 : i32
    %c0_i32_1 = arith.constant 0 : i32
    return %c0_i32, %c0_i32_0 : i32, i32
  }
  func.func @transform_3(%arg0: i32) -> (i32, i32) {
    %c0_i32 = arith.constant 0 : i32
    %c0_i32_0 = arith.constant 0 : i32
    %c0_i32_1 = arith.constant 0 : i32
    return %c0_i32, %c0_i32_0 : i32, i32
  }
  func.func @transform_4(%arg0: i32) -> (i32, i32) {
    %c0_i32 = arith.constant 0 : i32
    %c0_i32_0 = arith.constant 0 : i32
    %c0_i32_1 = arith.constant 0 : i32
    return %c0_i32, %c0_i32_0 : i32, i32
  }
  func.func @transform_5(%arg0: i32) -> (i32, i32) {
    %c0_i32 = arith.constant 0 : i32
    %c0_i32_0 = arith.constant 0 : i32
    %c0_i32_1 = arith.constant 0 : i32
    return %c0_i32, %c0_i32_0 : i32, i32
  }
  func.func @transform_6(%arg0: i32) -> (i32, i32) {
    %c0_i32 = arith.constant 0 : i32
    %c0_i32_0 = arith.constant 0 : i32
    %c0_i32_1 = arith.constant 0 : i32
    return %c0_i32, %c0_i32_0 : i32, i32
  }
  func.func @transform_7(%arg0: i32) -> (i32, i32) {
    %c0_i32 = arith.constant 0 : i32
    %c0_i32_0 = arith.constant 0 : i32
    %c0_i32_1 = arith.constant 0 : i32
    return %c0_i32, %c0_i32_0 : i32, i32
  }
  func.func @transform_8(%arg0: i32) -> (i32, i32) {
    %c0_i32 = arith.constant 0 : i32
    %c0_i32_0 = arith.constant 0 : i32
    %c0_i32_1 = arith.constant 0 : i32
    return %c0_i32, %c0_i32_0 : i32, i32
  }
  func.func @transform_9(%arg0: i32) -> (i32, i32) {
    %c0_i32 = arith.constant 0 : i32
    %c0_i32_0 = arith.constant 0 : i32
    %c0_i32_1 = arith.constant 0 : i32
    return %c0_i32, %c0_i32_0 : i32, i32
  }
  func.func @transform_10(%arg0: i32) -> (i32, i32) {
    %c0_i32 = arith.constant 0 : i32
    %c0_i32_0 = arith.constant 0 : i32
    %c0_i32_1 = arith.constant 0 : i32
    return %c0_i32, %c0_i32_0 : i32, i32
  }
  func.func @transform_11(%arg0: i32) -> (i32, i32) {
    %c0_i32 = arith.constant 0 : i32
    %c0_i32_0 = arith.constant 0 : i32
    return %arg0, %c0_i32 : i32, i32
  }
}

</mosaic_0001>

<llo_original>
// kernel: tpu_custom_call.1
$region0: #{tpu_custom_call.1}
  #allocation0 [shape = 'u32[]', space=smem, size = 0x4, offset = 0x4, fixed_abs, tag = 'smem constant byte address 0x4 - core index']
  #allocation1 [shape = 'u32[144,128]{1,0:T(1,128)}', space=vmem, size = 0x12000, scoped, tag = 'internal scratch']
  %s0 = inlined_call_operand.vmem [shape: f32[8,32], index: 0, kind: input, shape index: {}]
  %s1 = inlined_call_operand.vmem [shape: f32[32,256], index: 1, kind: input, shape index: {}]
  %s2 = inlined_call_operand.vmem [shape: f32[1,256], index: 2, kind: input, shape index: {}]
  %s3 = inlined_call_operand.hbm [shape: f32[256,256], index: 3, kind: input, shape index: {}]
  %s4 = inlined_call_operand.vmem [shape: f32[1,256], index: 4, kind: input, shape index: {}]
  %s5 = inlined_call_operand.hbm [shape: f32[256,256], index: 5, kind: input, shape index: {}]
  %s6 = inlined_call_operand.vmem [shape: f32[1,256], index: 6, kind: input, shape index: {}]
  %s7 = inlined_call_operand.hbm [shape: f32[256,256], index: 7, kind: input, shape index: {}]
  %s8 = inlined_call_operand.vmem [shape: f32[1,256], index: 8, kind: input, shape index: {}]
  %s9 = inlined_call_operand.vmem [shape: f32[256,8], index: 9, kind: input, shape index: {}]
  %s10 = inlined_call_operand.vmem [shape: f32[1,8], index: 10, kind: input, shape index: {}]
  %s11 = inlined_call_operand.hbm [shape: f32[8,8], index: 11, kind: output, shape index: {}]
  %s12 = sld [smem:[#allocation0]]
  $region66: #{tpu_custom_call.1} parent=0
    _
  %s14 = ssub.s32 1, %s12
  %s15 = scalar_select 0, %s14, %s12
  $region1: #{tpu_custom_call.1} parent=0
    #allocation2 [shape = 'u8[262144]{0}', space=vmem, size = 0x40000, scoped, tag = 'input window, operand 3, single buffered']
    #allocation3 [shape = 's32[1]{0}', space=sflag, size = 0x4, scoped, tag = 'scoped memory for tpu_custom_call.1']
    #allocation4 [shape = 's32[1]{0}', space=sflag, size = 0x4, scoped, tag = 'scoped memory for tpu_custom_call.1']
    #allocation5 [shape = 'u8[262144]{0}', space=vmem, size = 0x40000, scoped, tag = 'input window, operand 5, single buffered']
    #allocation6 [shape = 's32[1]{0}', space=sflag, size = 0x4, scoped, tag = 'scoped memory for tpu_custom_call.1']
    #allocation7 [shape = 'u8[262144]{0}', space=vmem, size = 0x40000, scoped, tag = 'input window, operand 7, single buffered']
    #allocation8 [shape = 'u8[4096]{0}', space=vmem, size = 0x1000, scoped, tag = 'output window, operand 0, single buffered']
    %16 = vsyncpa [#allocation3], 0
    %17 = vsyncpa [#allocation6], 0
    %18 = vsyncpa [#allocation4], 0
    // Predicated region
    $region2: #{tpu_custom_call.1} parent=1 // pred_check
      _
    $region3: #{tpu_custom_call.1} parent=1 // pred_check_branch
      %20 = sbr.rel (0) target = $region5
    $region4: #{tpu_custom_call.1} parent=1 // pred_region
      _
    $region5: #{tpu_custom_call.1} parent=1 // pred_fallthru
      _
    // Predicated region
    $region6: #{tpu_custom_call.1} parent=1 // pred_check
      _
    $region7: #{tpu_custom_call.1} parent=1 // pred_check_branch
      %22 = sbr.rel (0) target = $region9
    $region8: #{tpu_custom_call.1} parent=1 // pred_region
      _
    $region9: #{tpu_custom_call.1} parent=1 // pred_fallthru
      _
    // Predicated region
    $region10: #{tpu_custom_call.1} parent=1 // pred_check
      _
    $region11: #{tpu_custom_call.1} parent=1 // pred_check_branch
      %24 = sbr.rel (0) target = $region13
    $region12: #{tpu_custom_call.1} parent=1 // pred_region
      _
    $region13: #{tpu_custom_call.1} parent=1 // pred_fallthru
      _
    // Predicated region
    $region14: #{tpu_custom_call.1} parent=1 // pred_check
      _
    $region15: #{tpu_custom_call.1} parent=1 // pred_check_branch
      %26 = sbr.rel (0) target = $region17
    $region16: #{tpu_custom_call.1} parent=1 // pred_region
      %s28 = ssub.s32 8192, 8192
      %29 = vsyncadd [#allocation3], %s28
      %s30 = sshll.u32 [#allocation2], 4
      %s31 = int_to_ptr.vmem [resolvable:$true] %s30
      %36 = dma.hbm_to_vmem [thread:$0]  %s3, 8192, %s31, [#allocation3], 256, 256, 16
    $region17: #{tpu_custom_call.1} parent=1 // pred_fallthru
      _
    // Predicated region
    $region18: #{tpu_custom_call.1} parent=1 // pred_check
      _
    $region19: #{tpu_custom_call.1} parent=1 // pred_check_branch
      %38 = sbr.rel (0) target = $region21
    $region20: #{tpu_custom_call.1} parent=1 // pred_region
      _
    $region21: #{tpu_custom_call.1} parent=1 // pred_fallthru
      _
    // Predicated region
    $region22: #{tpu_custom_call.1} parent=1 // pred_check
      _
    $region23: #{tpu_custom_call.1} parent=1 // pred_check_branch
      %40 = sbr.rel (0) target = $region25
    $region24: #{tpu_custom_call.1} parent=1 // pred_region
      %s42 = ssub.s32 8192, 8192
      %43 = vsyncadd [#allocation6], %s42
      %s44 = sshll.u32 [#allocation5], 4
      %s45 = int_to_ptr.vmem [resolvable:$true] %s44
      %50 = dma.hbm_to_vmem [thread:$0]  %s5, 8192, %s45, [#allocation6], 256, 256, 16
    $region25: #{tpu_custom_call.1} parent=1 // pred_fallthru
      _
    // Predicated region
    $region26: #{tpu_custom_call.1} parent=1 // pred_check
      _
    $region27: #{tpu_custom_call.1} parent=1 // pred_check_branch
      %52 = sbr.rel (0) target = $region29
    $region28: #{tpu_custom_call.1} parent=1 // pred_region
      _
    $region29: #{tpu_custom_call.1} parent=1 // pred_fallthru
      _
    // Predicated region
    $region30: #{tpu_custom_call.1} parent=1 // pred_check
      _
    $region31: #{tpu_custom_call.1} parent=1 // pred_check_branch
      %54 = sbr.rel (0) target = $region33
    $region32: #{tpu_custom_call.1} parent=1 // pred_region
      %s56 = ssub.s32 8192, 8192
      %57 = vsyncadd [#allocation6], %s56
      %s58 = sshll.u32 [#allocation7], 4
      %s59 = int_to_ptr.vmem [resolvable:$true] %s58
      %64 = dma.hbm_to_vmem [thread:$0]  %s7, 8192, %s59, [#allocation6], 256, 256, 16
    $region33: #{tpu_custom_call.1} parent=1 // pred_fallthru
      _
    // Predicated region
    $region34: #{tpu_custom_call.1} parent=1 // pred_check
      _
    $region35: #{tpu_custom_call.1} parent=1 // pred_check_branch
      %66 = sbr.rel (0) target = $region37
    $region36: #{tpu_custom_call.1} parent=1 // pred_region
      _
    $region37: #{tpu_custom_call.1} parent=1 // pred_fallthru
      _
    // Predicated region
    $region38: #{tpu_custom_call.1} parent=1 // pred_check
      _
    $region39: #{tpu_custom_call.1} parent=1 // pred_check_branch
      %68 = sbr.rel (0) target = $region41
    $region40: #{tpu_custom_call.1} parent=1 // pred_region
      _
    $region41: #{tpu_custom_call.1} parent=1 // pred_fallthru
      _
    // Predicated region
    $region42: #{tpu_custom_call.1} parent=1 // pred_check
      _
    $region43: #{tpu_custom_call.1} parent=1 // pred_check_branch
      %70 = sbr.rel (0) target = $region45
    $region44: #{tpu_custom_call.1} parent=1 // pred_region
      _
    $region45: #{tpu_custom_call.1} parent=1 // pred_fallthru
      _
    // Predicated region
    $region46: #{tpu_custom_call.1} parent=1 // pred_check
      _
    $region47: #{tpu_custom_call.1} parent=1 // pred_check_branch
      %72 = sbr.rel (0) target = $region49
    $region48: #{tpu_custom_call.1} parent=1 // pred_region
      %73 = dma.done [#allocation3], 8192
    $region49: #{tpu_custom_call.1} parent=1 // pred_fallthru
      _
    // Predicated region
    $region50: #{tpu_custom_call.1} parent=1 // pred_check
      _
    $region51: #{tpu_custom_call.1} parent=1 // pred_check_branch
      %75 = sbr.rel (0) target = $region53
    $region52: #{tpu_custom_call.1} parent=1 // pred_region
      %76 = dma.done [#allocation6], 8192
    $region53: #{tpu_custom_call.1} parent=1 // pred_fallthru
      _
    // Predicated region
    $region54: #{tpu_custom_call.1} parent=1 // pred_check
      _
    $region55: #{tpu_custom_call.1} parent=1 // pred_check_branch
      %78 = sbr.rel (0) target = $region57
    $region56: #{tpu_custom_call.1} parent=1 // pred_region
      %79 = dma.done [#allocation6], 8192
    $region57: #{tpu_custom_call.1} parent=1 // pred_fallthru
      _
    %v80 = vld [vmem:[%s0] sm:$0xff]
    %v81 = vld [vmem:[%s1] sm:$0xff]
    %v82 = vld [vmem:[%s1 + $0x8] sm:$0xff]
    %v83 = vld [vmem:[%s1 + $0x10] sm:$0xff]
    %v84 = vld [vmem:[%s1 + $0x18] sm:$0xff]
    %v85 = vld [vmem:[%s1 + $0x20] sm:$0xff]
    %v86 = vld [vmem:[%s1 + $0x28] sm:$0xff]
    %v87 = vld [vmem:[%s1 + $0x30] sm:$0xff]
    %v88 = vld [vmem:[%s1 + $0x38] sm:$0xff]
    %v89 = vld [vmem:[%s2] sm:$0x3]
    %v91 = vlaneseq
    %v92 = vshrl.u32 %v91, 7
    %v93 = vsub.s32 0, %v92
    %v94 = vrot.slane %v89, %v93
    %v95 = vlaneseq
    %v96 = vshrl.u32 %v95, 7
    %v97 = vsub.s32 1, %v96
    %v98 = vrot.slane %v89, %v97
    %vm101 = vcmask 261120
    %v103 = vsel %vm101, %v80, 0
    %105 = vmatprep.subr.mxu0 %v82
    %106 = vmatpush1.msra.mxu0 %v81
    %107 = vmatprep.subr.mxu0 %v84
    %108 = vmatpush1.msra.mxu0 %v83
    %109 = vmatprep.subr.mxu0 %v86
    %110 = vmatpush1.msra.mxu0 %v85
    %111 = vmatprep.subr.mxu0 %v88
    %112 = vmatpush1.msra.mxu0 %v87
    %113 = vmatprep.subr.mxu0 0.0
    %114 = vmatpush1.msra.mxu0 0.0
    %115 = vmatprep.subr.mxu0 0.0
    %116 = vmatpush1.msra.mxu0 0.0
    %117 = vmatprep.subr.mxu0 0.0
    %118 = vmatpush1.msra.mxu0 0.0
    %119 = vmatprep.subr.mxu0 0.0
    %120 = vmatpush1.msra.mxu0 0.0
    %121 = vmatprep.subr.mxu0 0.0
    %122 = vmatpush1.msra.mxu0 0.0
    %123 = vmatprep.subr.mxu0 0.0
    %124 = vmatpush1.msra.mxu0 0.0
    %125 = vmatprep.subr.mxu0 0.0
    %126 = vmatpush1.msra.mxu0 0.0
    %127 = vmatprep.subr.mxu0 0.0
    %128 = vmatpush1.msra.mxu0 0.0
    %129 = vmatprep.subr.mxu0 0.0
    %130 = vmatpush1.msra.mxu0 0.0
    %131 = vmatprep.subr.mxu0 0.0
    %132 = vmatpush1.msra.mxu0 0.0
    %133 = vmatprep.subr.mxu0 0.0
    %134 = vmatpush1.msra.mxu0 0.0
    %135 = vmatprep.subr.mxu0 0.0
    %136 = vmatpush1.msra.mxu0 0.0
    %137 = vmatprep.subr.mxu0 0.0
    %138 = vmatpush1.msra.mxu0 0.0
    %139 = vmatprep.subr.mxu0 0.0
    %140 = vmatpush1.msra.mxu0 0.0
    %141 = vmatprep.subr.mxu0 0.0
    %142 = vmatpush1.msra.mxu0 0.0
    %143 = vmatprep.subr.mxu0 0.0
    %144 = vmatpush1.msra.mxu0 0.0
    %145 = vmatprep.subr.mxu0 0.0
    %146 = vmatpush1.msra.mxu0 0.0
    %147 = vmatprep.subr.mxu0 0.0
    %148 = vmatpush1.msra.mxu0 0.0
    %149 = vmatprep.subr.mxu0 0.0
    %150 = vmatpush1.msra.mxu0 0.0
    %151 = vmatprep.subr.mxu0 0.0
    %152 = vmatpush1.msra.mxu0 0.0
    %153 = vmatprep.subr.mxu0 0.0
    %154 = vmatpush1.msra.mxu0 0.0
    %155 = vmatprep.subr.mxu0 0.0
    %156 = vmatpush1.msra.mxu0 0.0
    %157 = vmatprep.subr.mxu0 0.0
    %158 = vmatpush1.msra.mxu0 0.0
    %159 = vmatprep.subr.mxu0 0.0
    %160 = vmatpush1.msra.mxu0 0.0
    %161 = vmatprep.subr.mxu0 0.0
    %162 = vmatpush1.msra.mxu0 0.0
    %163 = vmatprep.subr.mxu0 0.0
    %164 = vmatpush1.msra.mxu0 0.0
    %165 = vmatprep.subr.mxu0 0.0
    %166 = vmatpush1.msra.mxu0 0.0
    %167 = vmatprep.subr.mxu0 0.0
    %168 = vmatpush1.msra.mxu0 0.0
    %169 = vmatprep.mubr.f32.mxu0 0.0
    %170 = vmatmul.mubr.f32.gmra.mrb[0].mxu0 %v103
    %v171 = vpop.f32.mrb[0].mxu0
    %v172 = vadd.f32 %v94, %v171
    %v173 = vpop.f32.mrb[0].mxu0
    %v174 = vadd.f32 %v98, %v173
    %175 = vdwg.mxu0
    %v176 = vmax.f32 %v172, 0.0
    %v177 = vmax.f32 %v174, 0.0
    %v178 = vld [vmem:[#allocation2] sm:$0xff]
    %v179 = vld [vmem:[#allocation2 + $0x8] sm:$0xff]
    %v180 = vld [vmem:[#allocation2 + $0x10] sm:$0xff]
    %v181 = vld [vmem:[#allocation2 + $0x18] sm:$0xff]
    %v182 = vld [vmem:[#allocation2 + $0x20] sm:$0xff]
    %v183 = vld [vmem:[#allocation2 + $0x28] sm:$0xff]
    %v184 = vld [vmem:[#allocation2 + $0x30] sm:$0xff]
    %v185 = vld [vmem:[#allocation2 + $0x38] sm:$0xff]
    %v186 = vld [vmem:[#allocation2 + $0x40] sm:$0xff]
    %v187 = vld [vmem:[#allocation2 + $0x48] sm:$0xff]
    %v188 = vld [vmem:[#allocation2 + $0x50] sm:$0xff]
    %v189 = vld [vmem:[#allocation2 + $0x58] sm:$0xff]
    %v190 = vld [vmem:[#allocation2 + $0x60] sm:$0xff]
    %v191 = vld [vmem:[#allocation2 + $0x68] sm:$0xff]
    %v192 = vld [vmem:[#allocation2 + $0x70] sm:$0xff]
    %v193 = vld [vmem:[#allocation2 + $0x78] sm:$0xff]
    %v194 = vld [vmem:[#allocation2 + $0x80] sm:$0xff]
    %v195 = vld [vmem:[#allocation2 + $0x88] sm:$0xff]
    %v196 = vld [vmem:[#allocation2 + $0x90] sm:$0xff]
    %v197 = vld [vmem:[#allocation2 + $0x98] sm:$0xff]
    %v198 = vld [vmem:[#allocation2 + $0xa0] sm:$0xff]
    %v199 = vld [vmem:[#allocation2 + $0xa8] sm:$0xff]
    %v200 = vld [vmem:[#allocation2 + $0xb0] sm:$0xff]
    %v201 = vld [vmem:[#allocation2 + $0xb8] sm:$0xff]
    %v202 = vld [vmem:[#allocation2 + $0xc0] sm:$0xff]
    %v203 = vld [vmem:[#allocation2 + $0xc8] sm:$0xff]
    %v204 = vld [vmem:[#allocation2 + $0xd0] sm:$0xff]
    %v205 = vld [vmem:[#allocation2 + $0xd8] sm:$0xff]
    %v206 = vld [vmem:[#allocation2 + $0xe0] sm:$0xff]
    %v207 = vld [vmem:[#allocation2 + $0xe8] sm:$0xff]
    %v208 = vld [vmem:[#allocation2 + $0xf0] sm:$0xff]
    %v209 = vld [vmem:[#allocation2 + $0xf8] sm:$0xff]
    %v210 = vld [vmem:[#allocation2 + $0x100] sm:$0xff]
    %v211 = vld [vmem:[#allocation2 + $0x108] sm:$0xff]
    %v212 = vld [vmem:[#allocation2 + $0x110] sm:$0xff]
    %v213 = vld [vmem:[#allocation2 + $0x118] sm:$0xff]
    %v214 = vld [vmem:[#allocation2 + $0x120] sm:$0xff]
    %v215 = vld [vmem:[#allocation2 + $0x128] sm:$0xff]
    %v216 = vld [vmem:[#allocation2 + $0x130] sm:$0xff]
    %v217 = vld [vmem:[#allocation2 + $0x138] sm:$0xff]
    %v218 = vld [vmem:[#allocation2 + $0x140] sm:$0xff]
    %v219 = vld [vmem:[#allocation2 + $0x148] sm:$0xff]
    %v220 = vld [vmem:[#allocation2 + $0x150] sm:$0xff]
    %v221 = vld [vmem:[#allocation2 + $0x158] sm:$0xff]
    %v222 = vld [vmem:[#allocation2 + $0x160] sm:$0xff]
    %v223 = vld [vmem:[#allocation2 + $0x168] sm:$0xff]
    %v224 = vld [vmem:[#allocation2 + $0x170] sm:$0xff]
    %v225 = vld [vmem:[#allocation2 + $0x178] sm:$0xff]
    %v226 = vld [vmem:[#allocation2 + $0x180] sm:$0xff]
    %v227 = vld [vmem:[#allocation2 + $0x188] sm:$0xff]
    %v228 = vld [vmem:[#allocation2 + $0x190] sm:$0xff]
    %v229 = vld [vmem:[#allocation2 + $0x198] sm:$0xff]
    %v230 = vld [vmem:[#allocation2 + $0x1a0] sm:$0xff]
    %v231 = vld [vmem:[#allocation2 + $0x1a8] sm:$0xff]
    %v232 = vld [vmem:[#allocation2 + $0x1b0] sm:$0xff]
    %v233 = vld [vmem:[#allocation2 + $0x1b8] sm:$0xff]
    %v234 = vld [vmem:[#allocation2 + $0x1c0] sm:$0xff]
    %v235 = vld [vmem:[#allocation2 + $0x1c8] sm:$0xff]
    %v236 = vld [vmem:[#allocation2 + $0x1d0] sm:$0xff]
    %v237 = vld [vmem:[#allocation2 + $0x1d8] sm:$0xff]
    %v238 = vld [vmem:[#allocation2 + $0x1e0] sm:$0xff]
    %v239 = vld [vmem:[#allocation2 + $0x1e8] sm:$0xff]
    %v240 = vld [vmem:[#allocation2 + $0x1f0] sm:$0xff]
    %v241 = vld [vmem:[#allocation2 + $0x1f8] sm:$0xff]
    %v242 = vld [vmem:[%s4] sm:$0x3]
    %v244 = vlaneseq
    %v245 = vshrl.u32 %v244, 7
    %v246 = vsub.s32 0, %v245
    %v247 = vrot.slane %v242, %v246
    %v248 = vlaneseq
    %v249 = vshrl.u32 %v248, 7
    %v250 = vsub.s32 1, %v249
    %v251 = vrot.slane %v242, %v250
    %254 = vmatprep.subr.mxu0 %v179
    %255 = vmatpush1.msra.mxu0 %v178
    %256 = vmatprep.subr.mxu0 %v181
    %257 = vmatpush1.msra.mxu0 %v180
    %258 = vmatprep.subr.mxu0 %v183
    %259 = vmatpush1.msra.mxu0 %v182
    %260 = vmatprep.subr.mxu0 %v185
    %261 = vmatpush1.msra.mxu0 %v184
    %262 = vmatprep.subr.mxu0 %v187
    %263 = vmatpush1.msra.mxu0 %v186
    %264 = vmatprep.subr.mxu0 %v189
    %265 = vmatpush1.msra.mxu0 %v188
    %266 = vmatprep.subr.mxu0 %v191
    %267 = vmatpush1.msra.mxu0 %v190
    %268 = vmatprep.subr.mxu0 %v193
    %269 = vmatpush1.msra.mxu0 %v192
    %270 = vmatprep.subr.mxu0 %v195
    %271 = vmatpush1.msra.mxu0 %v194
    %272 = vmatprep.subr.mxu0 %v197
    %273 = vmatpush1.msra.mxu0 %v196
    %274 = vmatprep.subr.mxu0 %v199
    %275 = vmatpush1.msra.mxu0 %v198
    %276 = vmatprep.subr.mxu0 %v201
    %277 = vmatpush1.msra.mxu0 %v200
    %278 = vmatprep.subr.mxu0 %v203
    %279 = vmatpush1.msra.mxu0 %v202
    %280 = vmatprep.subr.mxu0 %v205
    %281 = vmatpush1.msra.mxu0 %v204
    %282 = vmatprep.subr.mxu0 %v207
    %283 = vmatpush1.msra.mxu0 %v206
    %284 = vmatprep.subr.mxu0 %v209
    %285 = vmatpush1.msra.mxu0 %v208
    %286 = vmatprep.subr.mxu0 %v211
    %287 = vmatpush1.msra.mxu0 %v210
    %288 = vmatprep.subr.mxu0 %v213
    %289 = vmatpush1.msra.mxu0 %v212
    %290 = vmatprep.subr.mxu0 %v215
    %291 = vmatpush1.msra.mxu0 %v214
    %292 = vmatprep.subr.mxu0 %v217
    %293 = vmatpush1.msra.mxu0 %v216
    %294 = vmatprep.subr.mxu0 %v219
    %295 = vmatpush1.msra.mxu0 %v218
    %296 = vmatprep.subr.mxu0 %v221
    %297 = vmatpush1.msra.mxu0 %v220
    %298 = vmatprep.subr.mxu0 %v223
    %299 = vmatpush1.msra.mxu0 %v222
    %300 = vmatprep.subr.mxu0 %v225
    %301 = vmatpush1.msra.mxu0 %v224
    %302 = vmatprep.subr.mxu0 %v227
    %303 = vmatpush1.msra.mxu0 %v226
    %304 = vmatprep.subr.mxu0 %v229
    %305 = vmatpush1.msra.mxu0 %v228
    %306 = vmatprep.subr.mxu0 %v231
    %307 = vmatpush1.msra.mxu0 %v230
    %308 = vmatprep.subr.mxu0 %v233
    %309 = vmatpush1.msra.mxu0 %v232
    %310 = vmatprep.subr.mxu0 %v235
    %311 = vmatpush1.msra.mxu0 %v234
    %312 = vmatprep.subr.mxu0 %v237
    %313 = vmatpush1.msra.mxu0 %v236
    %314 = vmatprep.subr.mxu0 %v239
    %315 = vmatpush1.msra.mxu0 %v238
    %316 = vmatprep.subr.mxu0 %v241
    %317 = vmatpush1.msra.mxu0 %v240
    %318 = vmatprep.mubr.f32.mxu0 %v177
    %319 = vmatmul.mubr.f32.gmra.mrb[0].mxu0 %v176
    %v320 = vpop.f32.mrb[0].mxu0
    %v321 = vadd.f32 %v247, %v320
    %v322 = vpop.f32.mrb[0].mxu0
    %v323 = vadd.f32 %v251, %v322
    %324 = vdwg.mxu0
    %v325 = vmax.f32 %v321, 0.0
    %v326 = vmax.f32 %v323, 0.0
    %v327 = vld [vmem:[#allocation5] sm:$0xff]
    %v328 = vld [vmem:[#allocation5 + $0x8] sm:$0xff]
    %v329 = vld [vmem:[#allocation5 + $0x10] sm:$0xff]
    %v330 = vld [vmem:[#allocation5 + $0x18] sm:$0xff]
    %v331 = vld [vmem:[#allocation5 + $0x20] sm:$0xff]
    %v332 = vld [vmem:[#allocation5 + $0x28] sm:$0xff]
    %v333 = vld [vmem:[#allocation5 + $0x30] sm:$0xff]
    %v334 = vld [vmem:[#allocation5 + $0x38] sm:$0xff]
    %v335 = vld [vmem:[#allocation5 + $0x40] sm:$0xff]
    %v336 = vld [vmem:[#allocation5 + $0x48] sm:$0xff]
    %v337 = vld [vmem:[#allocation5 + $0x50] sm:$0xff]
    %v338 = vld [vmem:[#allocation5 + $0x58] sm:$0xff]
    %v339 = vld [vmem:[#allocation5 + $0x60] sm:$0xff]
    %v340 = vld [vmem:[#allocation5 + $0x68] sm:$0xff]
    %v341 = vld [vmem:[#allocation5 + $0x70] sm:$0xff]
    %v342 = vld [vmem:[#allocation5 + $0x78] sm:$0xff]
    %v343 = vld [vmem:[#allocation5 + $0x80] sm:$0xff]
    %v344 = vld [vmem:[#allocation5 + $0x88] sm:$0xff]
    %v345 = vld [vmem:[#allocation5 + $0x90] sm:$0xff]
    %v346 = vld [vmem:[#allocation5 + $0x98] sm:$0xff]
    %v347 = vld [vmem:[#allocation5 + $0xa0] sm:$0xff]
    %v348 = vld [vmem:[#allocation5 + $0xa8] sm:$0xff]
    %v349 = vld [vmem:[#allocation5 + $0xb0] sm:$0xff]
    %v350 = vld [vmem:[#allocation5 + $0xb8] sm:$0xff]
    %v351 = vld [vmem:[#allocation5 + $0xc0] sm:$0xff]
    %v352 = vld [vmem:[#allocation5 + $0xc8] sm:$0xff]
    %v353 = vld [vmem:[#allocation5 + $0xd0] sm:$0xff]
    %v354 = vld [vmem:[#allocation5 + $0xd8] sm:$0xff]
    %v355 = vld [vmem:[#allocation5 + $0xe0] sm:$0xff]
    %v356 = vld [vmem:[#allocation5 + $0xe8] sm:$0xff]
    %v357 = vld [vmem:[#allocation5 + $0xf0] sm:$0xff]
    %v358 = vld [vmem:[#allocation5 + $0xf8] sm:$0xff]
    %v359 = vld [vmem:[#allocation5 + $0x100] sm:$0xff]
    %v360 = vld [vmem:[#allocation5 + $0x108] sm:$0xff]
    %v361 = vld [vmem:[#allocation5 + $0x110] sm:$0xff]
    %v362 = vld [vmem:[#allocation5 + $0x118] sm:$0xff]
    %v363 = vld [vmem:[#allocation5 + $0x120] sm:$0xff]
    %v364 = vld [vmem:[#allocation5 + $0x128] sm:$0xff]
    %v365 = vld [vmem:[#allocation5 + $0x130] sm:$0xff]
    %v366 = vld [vmem:[#allocation5 + $0x138] sm:$0xff]
    %v367 = vld [vmem:[#allocation5 + $0x140] sm:$0xff]
    %v368 = vld [vmem:[#allocation5 + $0x148] sm:$0xff]
    %v369 = vld [vmem:[#allocation5 + $0x150] sm:$0xff]
    %v370 = vld [vmem:[#allocation5 + $0x158] sm:$0xff]
    %v371 = vld [vmem:[#allocation5 + $0x160] sm:$0xff]
    %v372 = vld [vmem:[#allocation5 + $0x168] sm:$0xff]
    %v373 = vld [vmem:[#allocation5 + $0x170] sm:$0xff]
    %v374 = vld [vmem:[#allocation5 + $0x178] sm:$0xff]
    %v375 = vld [vmem:[#allocation5 + $0x180] sm:$0xff]
    %v376 = vld [vmem:[#allocation5 + $0x188] sm:$0xff]
    %v377 = vld [vmem:[#allocation5 + $0x190] sm:$0xff]
    %v378 = vld [vmem:[#allocation5 + $0x198] sm:$0xff]
    %v379 = vld [vmem:[#allocation5 + $0x1a0] sm:$0xff]
    %v380 = vld [vmem:[#allocation5 + $0x1a8] sm:$0xff]
    %v381 = vld [vmem:[#allocation5 + $0x1b0] sm:$0xff]
    %v382 = vld [vmem:[#allocation5 + $0x1b8] sm:$0xff]
    %v383 = vld [vmem:[#allocation5 + $0x1c0] sm:$0xff]
    %v384 = vld [vmem:[#allocation5 + $0x1c8] sm:$0xff]
    %v385 = vld [vmem:[#allocation5 + $0x1d0] sm:$0xff]
    %v386 = vld [vmem:[#allocation5 + $0x1d8] sm:$0xff]
    %v387 = vld [vmem:[#allocation5 + $0x1e0] sm:$0xff]
    %v388 = vld [vmem:[#allocation5 + $0x1e8] sm:$0xff]
    %v389 = vld [vmem:[#allocation5 + $0x1f0] sm:$0xff]
    %v390 = vld [vmem:[#allocation5 + $0x1f8] sm:$0xff]
    %v391 = vld [vmem:[%s6] sm:$0x3]
    %v393 = vlaneseq
    %v394 = vshrl.u32 %v393, 7
    %v395 = vsub.s32 0, %v394
    %v396 = vrot.slane %v391, %v395
    %v397 = vlaneseq
    %v398 = vshrl.u32 %v397, 7
    %v399 = vsub.s32 1, %v398
    %v400 = vrot.slane %v391, %v399
    %403 = vmatprep.subr.mxu0 %v328
    %404 = vmatpush1.msra.mxu0 %v327
    %405 = vmatprep.subr.mxu0 %v330
    %406 = vmatpush1.msra.mxu0 %v329
    %407 = vmatprep.subr.mxu0 %v332
    %408 = vmatpush1.msra.mxu0 %v331
    %409 = vmatprep.subr.mxu0 %v334
    %410 = vmatpush1.msra.mxu0 %v333
    %411 = vmatprep.subr.mxu0 %v336
    %412 = vmatpush1.msra.mxu0 %v335
    %413 = vmatprep.subr.mxu0 %v338
    %414 = vmatpush1.msra.mxu0 %v337
    %415 = vmatprep.subr.mxu0 %v340
    %416 = vmatpush1.msra.mxu0 %v339
    %417 = vmatprep.subr.mxu0 %v342
    %418 = vmatpush1.msra.mxu0 %v341
    %419 = vmatprep.subr.mxu0 %v344
    %420 = vmatpush1.msra.mxu0 %v343
    %421 = vmatprep.subr.mxu0 %v346
    %422 = vmatpush1.msra.mxu0 %v345
    %423 = vmatprep.subr.mxu0 %v348
    %424 = vmatpush1.msra.mxu0 %v347
    %425 = vmatprep.subr.mxu0 %v350
    %426 = vmatpush1.msra.mxu0 %v349
    %427 = vmatprep.subr.mxu0 %v352
    %428 = vmatpush1.msra.mxu0 %v351
    %429 = vmatprep.subr.mxu0 %v354
    %430 = vmatpush1.msra.mxu0 %v353
    %431 = vmatprep.subr.mxu0 %v356
    %432 = vmatpush1.msra.mxu0 %v355
    %433 = vmatprep.subr.mxu0 %v358
    %434 = vmatpush1.msra.mxu0 %v357
    %435 = vmatprep.subr.mxu0 %v360
    %436 = vmatpush1.msra.mxu0 %v359
    %437 = vmatprep.subr.mxu0 %v362
    %438 = vmatpush1.msra.mxu0 %v361
    %439 = vmatprep.subr.mxu0 %v364
    %440 = vmatpush1.msra.mxu0 %v363
    %441 = vmatprep.subr.mxu0 %v366
    %442 = vmatpush1.msra.mxu0 %v365
    %443 = vmatprep.subr.mxu0 %v368
    %444 = vmatpush1.msra.mxu0 %v367
    %445 = vmatprep.subr.mxu0 %v370
    %446 = vmatpush1.msra.mxu0 %v369
    %447 = vmatprep.subr.mxu0 %v372
    %448 = vmatpush1.msra.mxu0 %v371
    %449 = vmatprep.subr.mxu0 %v374
    %450 = vmatpush1.msra.mxu0 %v373
    %451 = vmatprep.subr.mxu0 %v376
    %452 = vmatpush1.msra.mxu0 %v375
    %453 = vmatprep.subr.mxu0 %v378
    %454 = vmatpush1.msra.mxu0 %v377
    %455 = vmatprep.subr.mxu0 %v380
    %456 = vmatpush1.msra.mxu0 %v379
    %457 = vmatprep.subr.mxu0 %v382
    %458 = vmatpush1.msra.mxu0 %v381
    %459 = vmatprep.subr.mxu0 %v384
    %460 = vmatpush1.msra.mxu0 %v383
    %461 = vmatprep.subr.mxu0 %v386
    %462 = vmatpush1.msra.mxu0 %v385
    %463 = vmatprep.subr.mxu0 %v388
    %464 = vmatpush1.msra.mxu0 %v387
    %465 = vmatprep.subr.mxu0 %v390
    %466 = vmatpush1.msra.mxu0 %v389
    %467 = vmatprep.mubr.f32.mxu0 %v326
    %468 = vmatmul.mubr.f32.gmra.mrb[0].mxu0 %v325
    %v469 = vpop.f32.mrb[0].mxu0
    %v470 = vadd.f32 %v396, %v469
    %v471 = vpop.f32.mrb[0].mxu0
    %v472 = vadd.f32 %v400, %v471
    %473 = vdwg.mxu0
    %v474 = vmax.f32 %v470, 0.0
    %v475 = vmax.f32 %v472, 0.0
    %v476 = vld [vmem:[#allocation7] sm:$0xff]
    %v477 = vld [vmem:[#allocation7 + $0x8] sm:$0xff]
    %v478 = vld [vmem:[#allocation7 + $0x10] sm:$0xff]
    %v479 = vld [vmem:[#allocation7 + $0x18] sm:$0xff]
    %v480 = vld [vmem:[#allocation7 + $0x20] sm:$0xff]
    %v481 = vld [vmem:[#allocation7 + $0x28] sm:$0xff]
    %v482 = vld [vmem:[#allocation7 + $0x30] sm:$0xff]
    %v483 = vld [vmem:[#allocation7 + $0x38] sm:$0xff]
    %v484 = vld [vmem:[#allocation7 + $0x40] sm:$0xff]
    %v485 = vld [vmem:[#allocation7 + $0x48] sm:$0xff]
    %v486 = vld [vmem:[#allocation7 + $0x50] sm:$0xff]
    %v487 = vld [vmem:[#allocation7 + $0x58] sm:$0xff]
    %v488 = vld [vmem:[#allocation7 + $0x60] sm:$0xff]
    %v489 = vld [vmem:[#allocation7 + $0x68] sm:$0xff]
    %v490 = vld [vmem:[#allocation7 + $0x70] sm:$0xff]
    %v491 = vld [vmem:[#allocation7 + $0x78] sm:$0xff]
    %v492 = vld [vmem:[#allocation7 + $0x80] sm:$0xff]
    %v493 = vld [vmem:[#allocation7 + $0x88] sm:$0xff]
    %v494 = vld [vmem:[#allocation7 + $0x90] sm:$0xff]
    %v495 = vld [vmem:[#allocation7 + $0x98] sm:$0xff]
    %v496 = vld [vmem:[#allocation7 + $0xa0] sm:$0xff]
    %v497 = vld [vmem:[#allocation7 + $0xa8] sm:$0xff]
    %v498 = vld [vmem:[#allocation7 + $0xb0] sm:$0xff]
    %v499 = vld [vmem:[#allocation7 + $0xb8] sm:$0xff]
    %v500 = vld [vmem:[#allocation7 + $0xc0] sm:$0xff]
    %v501 = vld [vmem:[#allocation7 + $0xc8] sm:$0xff]
    %v502 = vld [vmem:[#allocation7 + $0xd0] sm:$0xff]
    %v503 = vld [vmem:[#allocation7 + $0xd8] sm:$0xff]
    %v504 = vld [vmem:[#allocation7 + $0xe0] sm:$0xff]
    %v505 = vld [vmem:[#allocation7 + $0xe8] sm:$0xff]
    %v506 = vld [vmem:[#allocation7 + $0xf0] sm:$0xff]
    %v507 = vld [vmem:[#allocation7 + $0xf8] sm:$0xff]
    %v508 = vld [vmem:[#allocation7 + $0x100] sm:$0xff]
    %v509 = vld [vmem:[#allocation7 + $0x108] sm:$0xff]
    %v510 = vld [vmem:[#allocation7 + $0x110] sm:$0xff]
    %v511 = vld [vmem:[#allocation7 + $0x118] sm:$0xff]
    %v512 = vld [vmem:[#allocation7 + $0x120] sm:$0xff]
    %v513 = vld [vmem:[#allocation7 + $0x128] sm:$0xff]
    %v514 = vld [vmem:[#allocation7 + $0x130] sm:$0xff]
    %v515 = vld [vmem:[#allocation7 + $0x138] sm:$0xff]
    %v516 = vld [vmem:[#allocation7 + $0x140] sm:$0xff]
    %v517 = vld [vmem:[#allocation7 + $0x148] sm:$0xff]
    %v518 = vld [vmem:[#allocation7 + $0x150] sm:$0xff]
    %v519 = vld [vmem:[#allocation7 + $0x158] sm:$0xff]
    %v520 = vld [vmem:[#allocation7 + $0x160] sm:$0xff]
    %v521 = vld [vmem:[#allocation7 + $0x168] sm:$0xff]
    %v522 = vld [vmem:[#allocation7 + $0x170] sm:$0xff]
    %v523 = vld [vmem:[#allocation7 + $0x178] sm:$0xff]
    %v524 = vld [vmem:[#allocation7 + $0x180] sm:$0xff]
    %v525 = vld [vmem:[#allocation7 + $0x188] sm:$0xff]
    %v526 = vld [vmem:[#allocation7 + $0x190] sm:$0xff]
    %v527 = vld [vmem:[#allocation7 + $0x198] sm:$0xff]
    %v528 = vld [vmem:[#allocation7 + $0x1a0] sm:$0xff]
    %v529 = vld [vmem:[#allocation7 + $0x1a8] sm:$0xff]
    %v530 = vld [vmem:[#allocation7 + $0x1b0] sm:$0xff]
    %v531 = vld [vmem:[#allocation7 + $0x1b8] sm:$0xff]
    %v532 = vld [vmem:[#allocation7 + $0x1c0] sm:$0xff]
    %v533 = vld [vmem:[#allocation7 + $0x1c8] sm:$0xff]
    %v534 = vld [vmem:[#allocation7 + $0x1d0] sm:$0xff]
    %v535 = vld [vmem:[#allocation7 + $0x1d8] sm:$0xff]
    %v536 = vld [vmem:[#allocation7 + $0x1e0] sm:$0xff]
    %v537 = vld [vmem:[#allocation7 + $0x1e8] sm:$0xff]
    %v538 = vld [vmem:[#allocation7 + $0x1f0] sm:$0xff]
    %v539 = vld [vmem:[#allocation7 + $0x1f8] sm:$0xff]
    %v540 = vld [vmem:[%s8] sm:$0x3]
    %v542 = vlaneseq
    %v543 = vshrl.u32 %v542, 7
    %v544 = vsub.s32 0, %v543
    %v545 = vrot.slane %v540, %v544
    %v546 = vlaneseq
    %v547 = vshrl.u32 %v546, 7
    %v548 = vsub.s32 1, %v547
    %v549 = vrot.slane %v540, %v548
    %552 = vmatprep.subr.mxu0 %v477
    %553 = vmatpush1.msra.mxu0 %v476
    %554 = vmatprep.subr.mxu0 %v479
    %555 = vmatpush1.msra.mxu0 %v478
    %556 = vmatprep.subr.mxu0 %v481
    %557 = vmatpush1.msra.mxu0 %v480
    %558 = vmatprep.subr.mxu0 %v483
    %559 = vmatpush1.msra.mxu0 %v482
    %560 = vmatprep.subr.mxu0 %v485
    %561 = vmatpush1.msra.mxu0 %v484
    %562 = vmatprep.subr.mxu0 %v487
    %563 = vmatpush1.msra.mxu0 %v486
    %564 = vmatprep.subr.mxu0 %v489
    %565 = vmatpush1.msra.mxu0 %v488
    %566 = vmatprep.subr.mxu0 %v491
    %567 = vmatpush1.msra.mxu0 %v490
    %568 = vmatprep.subr.mxu0 %v493
    %569 = vmatpush1.msra.mxu0 %v492
    %570 = vmatprep.subr.mxu0 %v495
    %571 = vmatpush1.msra.mxu0 %v494
    %572 = vmatprep.subr.mxu0 %v497
    %573 = vmatpush1.msra.mxu0 %v496
    %574 = vmatprep.subr.mxu0 %v499
    %575 = vmatpush1.msra.mxu0 %v498
    %576 = vmatprep.subr.mxu0 %v501
    %577 = vmatpush1.msra.mxu0 %v500
    %578 = vmatprep.subr.mxu0 %v503
    %579 = vmatpush1.msra.mxu0 %v502
    %580 = vmatprep.subr.mxu0 %v505
    %581 = vmatpush1.msra.mxu0 %v504
    %582 = vmatprep.subr.mxu0 %v507
    %583 = vmatpush1.msra.mxu0 %v506
    %584 = vmatprep.subr.mxu0 %v509
    %585 = vmatpush1.msra.mxu0 %v508
    %586 = vmatprep.subr.mxu0 %v511
    %587 = vmatpush1.msra.mxu0 %v510
    %588 = vmatprep.subr.mxu0 %v513
    %589 = vmatpush1.msra.mxu0 %v512
    %590 = vmatprep.subr.mxu0 %v515
    %591 = vmatpush1.msra.mxu0 %v514
    %592 = vmatprep.subr.mxu0 %v517
    %593 = vmatpush1.msra.mxu0 %v516
    %594 = vmatprep.subr.mxu0 %v519
    %595 = vmatpush1.msra.mxu0 %v518
    %596 = vmatprep.subr.mxu0 %v521
    %597 = vmatpush1.msra.mxu0 %v520
    %598 = vmatprep.subr.mxu0 %v523
    %599 = vmatpush1.msra.mxu0 %v522
    %600 = vmatprep.subr.mxu0 %v525
    %601 = vmatpush1.msra.mxu0 %v524
    %602 = vmatprep.subr.mxu0 %v527
    %603 = vmatpush1.msra.mxu0 %v526
    %604 = vmatprep.subr.mxu0 %v529
    %605 = vmatpush1.msra.mxu0 %v528
    %606 = vmatprep.subr.mxu0 %v531
    %607 = vmatpush1.msra.mxu0 %v530
    %608 = vmatprep.subr.mxu0 %v533
    %609 = vmatpush1.msra.mxu0 %v532
    %610 = vmatprep.subr.mxu0 %v535
    %611 = vmatpush1.msra.mxu0 %v534
    %612 = vmatprep.subr.mxu0 %v537
    %613 = vmatpush1.msra.mxu0 %v536
    %614 = vmatprep.subr.mxu0 %v539
    %615 = vmatpush1.msra.mxu0 %v538
    %616 = vmatprep.mubr.f32.mxu0 %v475
    %617 = vmatmul.mubr.f32.gmra.mrb[0].mxu0 %v474
    %v618 = vpop.f32.mrb[0].mxu0
    %v619 = vadd.f32 %v545, %v618
    %v620 = vpop.f32.mrb[0].mxu0
    %v621 = vadd.f32 %v549, %v620
    %622 = vdwg.mxu0
    %v623 = vmax.f32 %v619, 0.0
    %v624 = vmax.f32 %v621, 0.0
    %v625 = vld [vmem:[%s9] sm:$0xff]
    %v626 = vld [vmem:[%s9 + $0x8] sm:$0xff]
    %v627 = vld [vmem:[%s9 + $0x10] sm:$0xff]
    %v628 = vld [vmem:[%s9 + $0x18] sm:$0xff]
    %v629 = vld [vmem:[%s9 + $0x20] sm:$0xff]
    %v630 = vld [vmem:[%s9 + $0x28] sm:$0xff]
    %v631 = vld [vmem:[%s9 + $0x30] sm:$0xff]
    %v632 = vld [vmem:[%s9 + $0x38] sm:$0xff]
    %v633 = vld [vmem:[%s9 + $0x40] sm:$0xff]
    %v634 = vld [vmem:[%s9 + $0x48] sm:$0xff]
    %v635 = vld [vmem:[%s9 + $0x50] sm:$0xff]
    %v636 = vld [vmem:[%s9 + $0x58] sm:$0xff]
    %v637 = vld [vmem:[%s9 + $0x60] sm:$0xff]
    %v638 = vld [vmem:[%s9 + $0x68] sm:$0xff]
    %v639 = vld [vmem:[%s9 + $0x70] sm:$0xff]
    %v640 = vld [vmem:[%s9 + $0x78] sm:$0xff]
    %v641 = vld [vmem:[%s9 + $0x80] sm:$0xff]
    %v642 = vld [vmem:[%s9 + $0x88] sm:$0xff]
    %v643 = vld [vmem:[%s9 + $0x90] sm:$0xff]
    %v644 = vld [vmem:[%s9 + $0x98] sm:$0xff]
    %v645 = vld [vmem:[%s9 + $0xa0] sm:$0xff]
    %v646 = vld [vmem:[%s9 + $0xa8] sm:$0xff]
    %v647 = vld [vmem:[%s9 + $0xb0] sm:$0xff]
    %v648 = vld [vmem:[%s9 + $0xb8] sm:$0xff]
    %v649 = vld [vmem:[%s9 + $0xc0] sm:$0xff]
    %v650 = vld [vmem:[%s9 + $0xc8] sm:$0xff]
    %v651 = vld [vmem:[%s9 + $0xd0] sm:$0xff]
    %v652 = vld [vmem:[%s9 + $0xd8] sm:$0xff]
    %v653 = vld [vmem:[%s9 + $0xe0] sm:$0xff]
    %v654 = vld [vmem:[%s9 + $0xe8] sm:$0xff]
    %v655 = vld [vmem:[%s9 + $0xf0] sm:$0xff]
    %v656 = vld [vmem:[%s9 + $0xf8] sm:$0xff]
    %v657 = vld [vmem:[%s10] sm:$0x1]
    %v659 = vlaneseq
    %v660 = vshrl.u32 %v659, 7
    %v661 = vsub.s32 0, %v660
    %v662 = vrot.slane %v657, %v661
    %664 = vmatprep.subr.mxu0 0.0
    %665 = vmatpush1.msra.mxu0 %v625
    %666 = vmatprep.subr.mxu0 0.0
    %667 = vmatpush1.msra.mxu0 %v626
    %668 = vmatprep.subr.mxu0 0.0
    %669 = vmatpush1.msra.mxu0 %v627
    %670 = vmatprep.subr.mxu0 0.0
    %671 = vmatpush1.msra.mxu0 %v628
    %672 = vmatprep.subr.mxu0 0.0
    %673 = vmatpush1.msra.mxu0 %v629
    %674 = vmatprep.subr.mxu0 0.0
    %675 = vmatpush1.msra.mxu0 %v630
    %676 = vmatprep.subr.mxu0 0.0
    %677 = vmatpush1.msra.mxu0 %v631
    %678 = vmatprep.subr.mxu0 0.0
    %679 = vmatpush1.msra.mxu0 %v632
    %680 = vmatprep.subr.mxu0 0.0
    %681 = vmatpush1.msra.mxu0 %v633
    %682 = vmatprep.subr.mxu0 0.0
    %683 = vmatpush1.msra.mxu0 %v634
    %684 = vmatprep.subr.mxu0 0.0
    %685 = vmatpush1.msra.mxu0 %v635
    %686 = vmatprep.subr.mxu0 0.0
    %687 = vmatpush1.msra.mxu0 %v636
    %688 = vmatprep.subr.mxu0 0.0
    %689 = vmatpush1.msra.mxu0 %v637
    %690 = vmatprep.subr.mxu0 0.0
    %691 = vmatpush1.msra.mxu0 %v638
    %692 = vmatprep.subr.mxu0 0.0
    %693 = vmatpush1.msra.mxu0 %v639
    %694 = vmatprep.subr.mxu0 0.0
    %695 = vmatpush1.msra.mxu0 %v640
    %696 = vmatprep.subr.mxu0 0.0
    %697 = vmatpush1.msra.mxu0 %v641
    %698 = vmatprep.subr.mxu0 0.0
    %699 = vmatpush1.msra.mxu0 %v642
    %700 = vmatprep.subr.mxu0 0.0
    %701 = vmatpush1.msra.mxu0 %v643
    %702 = vmatprep.subr.mxu0 0.0
    %703 = vmatpush1.msra.mxu0 %v644
    %704 = vmatprep.subr.mxu0 0.0
    %705 = vmatpush1.msra.mxu0 %v645
    %706 = vmatprep.subr.mxu0 0.0
    %707 = vmatpush1.msra.mxu0 %v646
    %708 = vmatprep.subr.mxu0 0.0
    %709 = vmatpush1.msra.mxu0 %v647
    %710 = vmatprep.subr.mxu0 0.0
    %711 = vmatpush1.msra.mxu0 %v648
    %712 = vmatprep.subr.mxu0 0.0
    %713 = vmatpush1.msra.mxu0 %v649
    %714 = vmatprep.subr.mxu0 0.0
    %715 = vmatpush1.msra.mxu0 %v650
    %716 = vmatprep.subr.mxu0 0.0
    %717 = vmatpush1.msra.mxu0 %v651
    %718 = vmatprep.subr.mxu0 0.0
    %719 = vmatpush1.msra.mxu0 %v652
    %720 = vmatprep.subr.mxu0 0.0
    %721 = vmatpush1.msra.mxu0 %v653
    %722 = vmatprep.subr.mxu0 0.0
    %723 = vmatpush1.msra.mxu0 %v654
    %724 = vmatprep.subr.mxu0 0.0
    %725 = vmatpush1.msra.mxu0 %v655
    %726 = vmatprep.subr.mxu0 0.0
    %727 = vmatpush1.msra.mxu0 %v656
    %728 = vmatprep.mubr.f32.mxu0 %v624
    %729 = vmatmul.mubr.f32.gmra.mrb[0].mxu0 %v623
    %v730 = vpop.f32.mrb[0].mxu0
    %v731 = vadd.f32 %v662, %v730
    %v732 = vpop.f32.mrb[0].mxu0
    %733 = vdwg.mxu0
    %vm734 = vcmask 64512
    %735 = vst.msk [vmem:[#allocation8] sm:$0xff] %vm734, %v731
    // Predicated region
    $region58: #{tpu_custom_call.1} parent=1 // pred_check
      _
    $region59: #{tpu_custom_call.1} parent=1 // pred_check_branch
      %737 = sbr.rel (0) target = $region61
    $region60: #{tpu_custom_call.1} parent=1 // pred_region
      %s739 = ssub.s32 128, 128
      %740 = vsyncadd [#allocation4], %s739
      %s742 = sshll.u32 [#allocation8], 4
      %s743 = int_to_ptr.vmem [resolvable:$true] %s742
      %745 = dma.vmem_to_hbm [thread:$0]  %s743, 128, %s11, [#allocation4]
    $region61: #{tpu_custom_call.1} parent=1 // pred_fallthru
      _
    // Predicated region
    $region62: #{tpu_custom_call.1} parent=1 // pred_check
      _
    $region63: #{tpu_custom_call.1} parent=1 // pred_check_branch
      %747 = sbr.rel (0) target = $region65
    $region64: #{tpu_custom_call.1} parent=1 // pred_region
      %748 = dma.done [#allocation4], 128
    $region65: #{tpu_custom_call.1} parent=1 // pred_fallthru
      _
    %749 = vsyncpa [#allocation3], 1
    %750 = vsyncpa [#allocation6], 1
    %751 = vsyncpa [#allocation4], 1

// kernel: tpu_custom_call.1
$region0: #{tpu_custom_call.1}
  #allocation0 [shape = 'u32[]', space=smem, size = 0x4, offset = 0x4, fixed_abs, tag = 'smem constant byte address 0x4 - core index']
  #allocation1 [shape = 'u32[144,128]{1,0:T(1,128)}', space=vmem, size = 0x12000, scoped, tag = 'internal scratch']
  %s0 = inlined_call_operand.vmem [shape: f32[8,32], index: 0, kind: input, shape index: {}]
  %s1 = inlined_call_operand.vmem [shape: f32[32,256], index: 1, kind: input, shape index: {}]
  %s2 = inlined_call_operand.vmem [shape: f32[1,256], index: 2, kind: input, shape index: {}]
  %s3 = inlined_call_operand.hbm [shape: f32[256,256], index: 3, kind: input, shape index: {}]
  %s4 = inlined_call_operand.vmem [shape: f32[1,256], index: 4, kind: input, shape index: {}]
  %s5 = inlined_call_operand.hbm [shape: f32[256,256], index: 5, kind: input, shape index: {}]
  %s6 = inlined_call_operand.vmem [shape: f32[1,256], index: 6, kind: input, shape index: {}]
  %s7 = inlined_call_operand.hbm [shape: f32[256,256], index: 7, kind: input, shape index: {}]
  %s8 = inlined_call_operand.vmem [shape: f32[1,256], index: 8, kind: input, shape index: {}]
  %s9 = inlined_call_operand.vmem [shape: f32[256,8], index: 9, kind: input, shape index: {}]
  %s10 = inlined_call_operand.vmem [shape: f32[1,8], index: 10, kind: input, shape index: {}]
  %s11 = inlined_call_operand.hbm [shape: f32[8,8], index: 11, kind: output, shape index: {}]
  %s12 = sld [smem:[#allocation0]]
  $region66: #{tpu_custom_call.1} parent=0
    _
  %s14 = ssub.s32 1, %s12
  %s15 = scalar_select 0, %s14, %s12
  $region1: #{tpu_custom_call.1} parent=0
    #allocation2 [shape = 'u8[262144]{0}', space=vmem, size = 0x40000, scoped, tag = 'input window, operand 3, single buffered']
    #allocation3 [shape = 's32[1]{0}', space=sflag, size = 0x4, scoped, tag = 'scoped memory for tpu_custom_call.1']
    #allocation4 [shape = 's32[1]{0}', space=sflag, size = 0x4, scoped, tag = 'scoped memory for tpu_custom_call.1']
    #allocation5 [shape = 'u8[262144]{0}', space=vmem, size = 0x40000, scoped, tag = 'input window, operand 5, single buffered']
    #allocation6 [shape = 's32[1]{0}', space=sflag, size = 0x4, scoped, tag = 'scoped memory for tpu_custom_call.1']
    #allocation7 [shape = 'u8[262144]{0}', space=vmem, size = 0x40000, scoped, tag = 'input window, operand 7, single buffered']
    #allocation8 [shape = 'u8[4096]{0}', space=vmem, size = 0x1000, scoped, tag = 'output window, operand 0, single buffered']
    %16 = vsyncpa [#allocation3], 0
    %17 = vsyncpa [#allocation6], 0
    %18 = vsyncpa [#allocation4], 0
    // Predicated region
    $region2: #{tpu_custom_call.1} parent=1 // pred_check
      _
    $region3: #{tpu_custom_call.1} parent=1 // pred_check_branch
      %20 = sbr.rel (0) target = $region5
    $region4: #{tpu_custom_call.1} parent=1 // pred_region
      _
    $region5: #{tpu_custom_call.1} parent=1 // pred_fallthru
      _
    // Predicated region
    $region6: #{tpu_custom_call.1} parent=1 // pred_check
      _
    $region7: #{tpu_custom_call.1} parent=1 // pred_check_branch
      %22 = sbr.rel (0) target = $region9
    $region8: #{tpu_custom_call.1} parent=1 // pred_region
      _
    $region9: #{tpu_custom_call.1} parent=1 // pred_fallthru
      _
    // Predicated region
    $region10: #{tpu_custom_call.1} parent=1 // pred_check
      _
    $region11: #{tpu_custom_call.1} parent=1 // pred_check_branch
      %24 = sbr.rel (0) target = $region13
    $region12: #{tpu_custom_call.1} parent=1 // pred_region
      _
    $region13: #{tpu_custom_call.1} parent=1 // pred_fallthru
      _
    // Predicated region
    $region14: #{tpu_custom_call.1} parent=1 // pred_check
      _
    $region15: #{tpu_custom_call.1} parent=1 // pred_check_branch
      %26 = sbr.rel (0) target = $region17
    $region16: #{tpu_custom_call.1} parent=1 // pred_region
      %s28 = ssub.s32 8192, 8192
      %29 = vsyncadd [#allocation3], %s28
      %s30 = sshll.u32 [#allocation2], 4
      %s31 = int_to_ptr.vmem [resolvable:$true] %s30
      %36 = dma.hbm_to_vmem [thread:$0]  %s3, 8192, %s31, [#allocation3], 256, 256, 16
    $region17: #{tpu_custom_call.1} parent=1 // pred_fallthru
      _
    // Predicated region
    $region18: #{tpu_custom_call.1} parent=1 // pred_check
      _
    $region19: #{tpu_custom_call.1} parent=1 // pred_check_branch
      %38 = sbr.rel (0) target = $region21
    $region20: #{tpu_custom_call.1} parent=1 // pred_region
      _
    $region21: #{tpu_custom_call.1} parent=1 // pred_fallthru
      _
    // Predicated region
    $region22: #{tpu_custom_call.1} parent=1 // pred_check
      _
    $region23: #{tpu_custom_call.1} parent=1 // pred_check_branch
      %40 = sbr.rel (0) target = $region25
    $region24: #{tpu_custom_call.1} parent=1 // pred_region
      %s42 = ssub.s32 8192, 8192
      %43 = vsyncadd [#allocation6], %s42
      %s44 = sshll.u32 [#allocation5], 4
      %s45 = int_to_ptr.vmem [resolvable:$true] %s44
      %50 = dma.hbm_to_vmem [thread:$0]  %s5, 8192, %s45, [#allocation6], 256, 256, 16
    $region25: #{tpu_custom_call.1} parent=1 // pred_fallthru
      _
    // Predicated region
    $region26: #{tpu_custom_call.1} parent=1 // pred_check
      _
    $region27: #{tpu_custom_call.1} parent=1 // pred_check_branch
      %52 = sbr.rel (0) target = $region29
    $region28: #{tpu_custom_call.1} parent=1 // pred_region
      _
    $region29: #{tpu_custom_call.1} parent=1 // pred_fallthru
      _
    // Predicated region
    $region30: #{tpu_custom_call.1} parent=1 // pred_check
      _
    $region31: #{tpu_custom_call.1} parent=1 // pred_check_branch
      %54 = sbr.rel (0) target = $region33
    $region32: #{tpu_custom_call.1} parent=1 // pred_region
      %s56 = ssub.s32 8192, 8192
      %57 = vsyncadd [#allocation6], %s56
      %s58 = sshll.u32 [#allocation7], 4
      %s59 = int_to_ptr.vmem [resolvable:$true] %s58
      %64 = dma.hbm_to_vmem [thread:$0]  %s7, 8192, %s59, [#allocation6], 256, 256, 16
    $region33: #{tpu_custom_call.1} parent=1 // pred_fallthru
      _
    // Predicated region
    $region34: #{tpu_custom_call.1} parent=1 // pred_check
      _
    $region35: #{tpu_custom_call.1} parent=1 // pred_check_branch
      %66 = sbr.rel (0) target = $region37
    $region36: #{tpu_custom_call.1} parent=1 // pred_region
      _
    $region37: #{tpu_custom_call.1} parent=1 // pred_fallthru
      _
    // Predicated region
    $region38: #{tpu_custom_call.1} parent=1 // pred_check
      _
    $region39: #{tpu_custom_call.1} parent=1 // pred_check_branch
      %68 = sbr.rel (0) target = $region41
    $region40: #{tpu_custom_call.1} parent=1 // pred_region
      _
    $region41: #{tpu_custom_call.1} parent=1 // pred_fallthru
      _
    // Predicated region
    $region42: #{tpu_custom_call.1} parent=1 // pred_check
      _
    $region43: #{tpu_custom_call.1} parent=1 // pred_check_branch
      %70 = sbr.rel (0) target = $region45
    $region44: #{tpu_custom_call.1} parent=1 // pred_region
      _
    $region45: #{tpu_custom_call.1} parent=1 // pred_fallthru
      _
    // Predicated region
    $region46: #{tpu_custom_call.1} parent=1 // pred_check
      _
    $region47: #{tpu_custom_call.1} parent=1 // pred_check_branch
      %72 = sbr.rel (0) target = $region49
    $region48: #{tpu_custom_call.1} parent=1 // pred_region
      %73 = dma.done [#allocation3], 8192
    $region49: #{tpu_custom_call.1} parent=1 // pred_fallthru
      _
    // Predicated region
    $region50: #{tpu_custom_call.1} parent=1 // pred_check
      _
    $region51: #{tpu_custom_call.1} parent=1 // pred_check_branch
      %75 = sbr.rel (0) target = $region53
    $region52: #{tpu_custom_call.1} parent=1 // pred_region
      %76 = dma.done [#allocation6], 8192
    $region53: #{tpu_custom_call.1} parent=1 // pred_fallthru
      _
    // Predicated region
    $region54: #{tpu_custom_call.1} parent=1 // pred_check
      _
    $region55: #{tpu_custom_call.1} parent=1 // pred_check_branch
      %78 = sbr.rel (0) target = $region57
    $region56: #{tpu_custom_call.1} parent=1 // pred_region
      %79 = dma.done [#allocation6], 8192
    $region57: #{tpu_custom_call.1} parent=1 // pred_fallthru
      _
    %v80 = vld [vmem:[%s0] sm:$0xff]
    %v81 = vld [vmem:[%s1] sm:$0xff]
    %v82 = vld [vmem:[%s1 + $0x8] sm:$0xff]
    %v83 = vld [vmem:[%s1 + $0x10] sm:$0xff]
    %v84 = vld [vmem:[%s1 + $0x18] sm:$0xff]
    %v85 = vld [vmem:[%s1 + $0x20] sm:$0xff]
    %v86 = vld [vmem:[%s1 + $0x28] sm:$0xff]
    %v87 = vld [vmem:[%s1 + $0x30] sm:$0xff]
    %v88 = vld [vmem:[%s1 + $0x38] sm:$0xff]
    %v89 = vld [vmem:[%s2] sm:$0x3]
    %v91 = vlaneseq
    %v92 = vshrl.u32 %v91, 7
    %v93 = vsub.s32 0, %v92
    %v94 = vrot.slane %v89, %v93
    %v95 = vlaneseq
    %v96 = vshrl.u32 %v95, 7
    %v97 = vsub.s32 1, %v96
    %v98 = vrot.slane %v89, %v97
    %vm101 = vcmask 261120
    %v103 = vsel %vm101, %v80, 0
    %105 = vmatprep.subr.mxu0 %v82
    %106 = vmatpush1.msra.mxu0 %v81
    %107 = vmatprep.subr.mxu0 %v84
    %108 = vmatpush1.msra.mxu0 %v83
    %109 = vmatprep.subr.mxu0 %v86
    %110 = vmatpush1.msra.mxu0 %v85
    %111 = vmatprep.subr.mxu0 %v88
    %112 = vmatpush1.msra.mxu0 %v87
    %113 = vmatprep.subr.mxu0 0.0
    %114 = vmatpush1.msra.mxu0 0.0
    %115 = vmatprep.subr.mxu0 0.0
    %116 = vmatpush1.msra.mxu0 0.0
    %117 = vmatprep.subr.mxu0 0.0
    %118 = vmatpush1.msra.mxu0 0.0
    %119 = vmatprep.subr.mxu0 0.0
    %120 = vmatpush1.msra.mxu0 0.0
    %121 = vmatprep.subr.mxu0 0.0
    %122 = vmatpush1.msra.mxu0 0.0
    %123 = vmatprep.subr.mxu0 0.0
    %124 = vmatpush1.msra.mxu0 0.0
    %125 = vmatprep.subr.mxu0 0.0
    %126 = vmatpush1.msra.mxu0 0.0
    %127 = vmatprep.subr.mxu0 0.0
    %128 = vmatpush1.msra.mxu0 0.0
    %129 = vmatprep.subr.mxu0 0.0
    %130 = vmatpush1.msra.mxu0 0.0
    %131 = vmatprep.subr.mxu0 0.0
    %132 = vmatpush1.msra.mxu0 0.0
    %133 = vmatprep.subr.mxu0 0.0
    %134 = vmatpush1.msra.mxu0 0.0
    %135 = vmatprep.subr.mxu0 0.0
    %136 = vmatpush1.msra.mxu0 0.0
    %137 = vmatprep.subr.mxu0 0.0
    %138 = vmatpush1.msra.mxu0 0.0
    %139 = vmatprep.subr.mxu0 0.0
    %140 = vmatpush1.msra.mxu0 0.0
    %141 = vmatprep.subr.mxu0 0.0
    %142 = vmatpush1.msra.mxu0 0.0
    %143 = vmatprep.subr.mxu0 0.0
    %144 = vmatpush1.msra.mxu0 0.0
    %145 = vmatprep.subr.mxu0 0.0
    %146 = vmatpush1.msra.mxu0 0.0
    %147 = vmatprep.subr.mxu0 0.0
    %148 = vmatpush1.msra.mxu0 0.0
    %149 = vmatprep.subr.mxu0 0.0
    %150 = vmatpush1.msra.mxu0 0.0
    %151 = vmatprep.subr.mxu0 0.0
    %152 = vmatpush1.msra.mxu0 0.0
    %153 = vmatprep.subr.mxu0 0.0
    %154 = vmatpush1.msra.mxu0 0.0
    %155 = vmatprep.subr.mxu0 0.0
    %156 = vmatpush1.msra.mxu0 0.0
    %157 = vmatprep.subr.mxu0 0.0
    %158 = vmatpush1.msra.mxu0 0.0
    %159 = vmatprep.subr.mxu0 0.0
    %160 = vmatpush1.msra.mxu0 0.0
    %161 = vmatprep.subr.mxu0 0.0
    %162 = vmatpush1.msra.mxu0 0.0
    %163 = vmatprep.subr.mxu0 0.0
    %164 = vmatpush1.msra.mxu0 0.0
    %165 = vmatprep.subr.mxu0 0.0
    %166 = vmatpush1.msra.mxu0 0.0
    %167 = vmatprep.subr.mxu0 0.0
    %168 = vmatpush1.msra.mxu0 0.0
    %169 = vmatprep.mubr.f32.mxu0 0.0
    %170 = vmatmul.mubr.f32.gmra.mrb[0].mxu0 %v103
    %v171 = vpop.f32.mrb[0].mxu0
    %v172 = vadd.f32 %v94, %v171
    %v173 = vpop.f32.mrb[0].mxu0
    %v174 = vadd.f32 %v98, %v173
    %175 = vdwg.mxu0
    %v176 = vmax.f32 %v172, 0.0
    %v177 = vmax.f32 %v174, 0.0
    %v178 = vld [vmem:[#allocation2] sm:$0xff]
    %v179 = vld [vmem:[#allocation2 + $0x8] sm:$0xff]
    %v180 = vld [vmem:[#allocation2 + $0x10] sm:$0xff]
    %v181 = vld [vmem:[#allocation2 + $0x18] sm:$0xff]
    %v182 = vld [vmem:[#allocation2 + $0x20] sm:$0xff]
    %v183 = vld [vmem:[#allocation2 + $0x28] sm:$0xff]
    %v184 = vld [vmem:[#allocation2 + $0x30] sm:$0xff]
    %v185 = vld [vmem:[#allocation2 + $0x38] sm:$0xff]
    %v186 = vld [vmem:[#allocation2 + $0x40] sm:$0xff]
    %v187 = vld [vmem:[#allocation2 + $0x48] sm:$0xff]
    %v188 = vld [vmem:[#allocation2 + $0x50] sm:$0xff]
    %v189 = vld [vmem:[#allocation2 + $0x58] sm:$0xff]
    %v190 = vld [vmem:[#allocation2 + $0x60] sm:$0xff]
    %v191 = vld [vmem:[#allocation2 + $0x68] sm:$0xff]
    %v192 = vld [vmem:[#allocation2 + $0x70] sm:$0xff]
    %v193 = vld [vmem:[#allocation2 + $0x78] sm:$0xff]
    %v194 = vld [vmem:[#allocation2 + $0x80] sm:$0xff]
    %v195 = vld [vmem:[#allocation2 + $0x88] sm:$0xff]
    %v196 = vld [vmem:[#allocation2 + $0x90] sm:$0xff]
    %v197 = vld [vmem:[#allocation2 + $0x98] sm:$0xff]
    %v198 = vld [vmem:[#allocation2 + $0xa0] sm:$0xff]
    %v199 = vld [vmem:[#allocation2 + $0xa8] sm:$0xff]
    %v200 = vld [vmem:[#allocation2 + $0xb0] sm:$0xff]
    %v201 = vld [vmem:[#allocation2 + $0xb8] sm:$0xff]
    %v202 = vld [vmem:[#allocation2 + $0xc0] sm:$0xff]
    %v203 = vld [vmem:[#allocation2 + $0xc8] sm:$0xff]
    %v204 = vld [vmem:[#allocation2 + $0xd0] sm:$0xff]
    %v205 = vld [vmem:[#allocation2 + $0xd8] sm:$0xff]
    %v206 = vld [vmem:[#allocation2 + $0xe0] sm:$0xff]
    %v207 = vld [vmem:[#allocation2 + $0xe8] sm:$0xff]
    %v208 = vld [vmem:[#allocation2 + $0xf0] sm:$0xff]
    %v209 = vld [vmem:[#allocation2 + $0xf8] sm:$0xff]
    %v210 = vld [vmem:[#allocation2 + $0x100] sm:$0xff]
    %v211 = vld [vmem:[#allocation2 + $0x108] sm:$0xff]
    %v212 = vld [vmem:[#allocation2 + $0x110] sm:$0xff]
    %v213 = vld [vmem:[#allocation2 + $0x118] sm:$0xff]
    %v214 = vld [vmem:[#allocation2 + $0x120] sm:$0xff]
    %v215 = vld [vmem:[#allocation2 + $0x128] sm:$0xff]
    %v216 = vld [vmem:[#allocation2 + $0x130] sm:$0xff]
    %v217 = vld [vmem:[#allocation2 + $0x138] sm:$0xff]
    %v218 = vld [vmem:[#allocation2 + $0x140] sm:$0xff]
    %v219 = vld [vmem:[#allocation2 + $0x148] sm:$0xff]
    %v220 = vld [vmem:[#allocation2 + $0x150] sm:$0xff]
    %v221 = vld [vmem:[#allocation2 + $0x158] sm:$0xff]
    %v222 = vld [vmem:[#allocation2 + $0x160] sm:$0xff]
    %v223 = vld [vmem:[#allocation2 + $0x168] sm:$0xff]
    %v224 = vld [vmem:[#allocation2 + $0x170] sm:$0xff]
    %v225 = vld [vmem:[#allocation2 + $0x178] sm:$0xff]
    %v226 = vld [vmem:[#allocation2 + $0x180] sm:$0xff]
    %v227 = vld [vmem:[#allocation2 + $0x188] sm:$0xff]
    %v228 = vld [vmem:[#allocation2 + $0x190] sm:$0xff]
    %v229 = vld [vmem:[#allocation2 + $0x198] sm:$0xff]
    %v230 = vld [vmem:[#allocation2 + $0x1a0] sm:$0xff]
    %v231 = vld [vmem:[#allocation2 + $0x1a8] sm:$0xff]
    %v232 = vld [vmem:[#allocation2 + $0x1b0] sm:$0xff]
    %v233 = vld [vmem:[#allocation2 + $0x1b8] sm:$0xff]
    %v234 = vld [vmem:[#allocation2 + $0x1c0] sm:$0xff]
    %v235 = vld [vmem:[#allocation2 + $0x1c8] sm:$0xff]
    %v236 = vld [vmem:[#allocation2 + $0x1d0] sm:$0xff]
    %v237 = vld [vmem:[#allocation2 + $0x1d8] sm:$0xff]
    %v238 = vld [vmem:[#allocation2 + $0x1e0] sm:$0xff]
    %v239 = vld [vmem:[#allocation2 + $0x1e8] sm:$0xff]
    %v240 = vld [vmem:[#allocation2 + $0x1f0] sm:$0xff]
    %v241 = vld [vmem:[#allocation2 + $0x1f8] sm:$0xff]
    %v242 = vld [vmem:[%s4] sm:$0x3]
    %v244 = vlaneseq
    %v245 = vshrl.u32 %v244, 7
    %v246 = vsub.s32 0, %v245
    %v247 = vrot.slane %v242, %v246
    %v248 = vlaneseq
    %v249 = vshrl.u32 %v248, 7
    %v250 = vsub.s32 1, %v249
    %v251 = vrot.slane %v242, %v250
    %254 = vmatprep.subr.mxu0 %v179
    %255 = vmatpush1.msra.mxu0 %v178
    %256 = vmatprep.subr.mxu0 %v181
    %257 = vmatpush1.msra.mxu0 %v180
    %258 = vmatprep.subr.mxu0 %v183
    %259 = vmatpush1.msra.mxu0 %v182
    %260 = vmatprep.subr.mxu0 %v185
    %261 = vmatpush1.msra.mxu0 %v184
    %262 = vmatprep.subr.mxu0 %v187
    %263 = vmatpush1.msra.mxu0 %v186
    %264 = vmatprep.subr.mxu0 %v189
    %265 = vmatpush1.msra.mxu0 %v188
    %266 = vmatprep.subr.mxu0 %v191
    %267 = vmatpush1.msra.mxu0 %v190
    %268 = vmatprep.subr.mxu0 %v193
    %269 = vmatpush1.msra.mxu0 %v192
    %270 = vmatprep.subr.mxu0 %v195
    %271 = vmatpush1.msra.mxu0 %v194
    %272 = vmatprep.subr.mxu0 %v197
    %273 = vmatpush1.msra.mxu0 %v196
    %274 = vmatprep.subr.mxu0 %v199
    %275 = vmatpush1.msra.mxu0 %v198
    %276 = vmatprep.subr.mxu0 %v201
    %277 = vmatpush1.msra.mxu0 %v200
    %278 = vmatprep.subr.mxu0 %v203
    %279 = vmatpush1.msra.mxu0 %v202
    %280 = vmatprep.subr.mxu0 %v205
    %281 = vmatpush1.msra.mxu0 %v204
    %282 = vmatprep.subr.mxu0 %v207
    %283 = vmatpush1.msra.mxu0 %v206
    %284 = vmatprep.subr.mxu0 %v209
    %285 = vmatpush1.msra.mxu0 %v208
    %286 = vmatprep.subr.mxu0 %v211
    %287 = vmatpush1.msra.mxu0 %v210
    %288 = vmatprep.subr.mxu0 %v213
    %289 = vmatpush1.msra.mxu0 %v212
    %290 = vmatprep.subr.mxu0 %v215
    %291 = vmatpush1.msra.mxu0 %v214
    %292 = vmatprep.subr.mxu0 %v217
    %293 = vmatpush1.msra.mxu0 %v216
    %294 = vmatprep.subr.mxu0 %v219
    %295 = vmatpush1.msra.mxu0 %v218
    %296 = vmatprep.subr.mxu0 %v221
    %297 = vmatpush1.msra.mxu0 %v220
    %298 = vmatprep.subr.mxu0 %v223
    %299 = vmatpush1.msra.mxu0 %v222
    %300 = vmatprep.subr.mxu0 %v225
    %301 = vmatpush1.msra.mxu0 %v224
    %302 = vmatprep.subr.mxu0 %v227
    %303 = vmatpush1.msra.mxu0 %v226
    %304 = vmatprep.subr.mxu0 %v229
    %305 = vmatpush1.msra.mxu0 %v228
    %306 = vmatprep.subr.mxu0 %v231
    %307 = vmatpush1.msra.mxu0 %v230
    %308 = vmatprep.subr.mxu0 %v233
    %309 = vmatpush1.msra.mxu0 %v232
    %310 = vmatprep.subr.mxu0 %v235
    %311 = vmatpush1.msra.mxu0 %v234
    %312 = vmatprep.subr.mxu0 %v237
    %313 = vmatpush1.msra.mxu0 %v236
    %314 = vmatprep.subr.mxu0 %v239
    %315 = vmatpush1.msra.mxu0 %v238
    %316 = vmatprep.subr.mxu0 %v241
    %317 = vmatpush1.msra.mxu0 %v240
    %318 = vmatprep.mubr.f32.mxu0 %v177
    %319 = vmatmul.mubr.f32.gmra.mrb[0].mxu0 %v176
    %v320 = vpop.f32.mrb[0].mxu0
    %v321 = vadd.f32 %v247, %v320
    %v322 = vpop.f32.mrb[0].mxu0
    %v323 = vadd.f32 %v251, %v322
    %324 = vdwg.mxu0
    %v325 = vmax.f32 %v321, 0.0
    %v326 = vmax.f32 %v323, 0.0
    %v327 = vld [vmem:[#allocation5] sm:$0xff]
    %v328 = vld [vmem:[#allocation5 + $0x8] sm:$0xff]
    %v329 = vld [vmem:[#allocation5 + $0x10] sm:$0xff]
    %v330 = vld [vmem:[#allocation5 + $0x18] sm:$0xff]
    %v331 = vld [vmem:[#allocation5 + $0x20] sm:$0xff]
    %v332 = vld [vmem:[#allocation5 + $0x28] sm:$0xff]
    %v333 = vld [vmem:[#allocation5 + $0x30] sm:$0xff]
    %v334 = vld [vmem:[#allocation5 + $0x38] sm:$0xff]
    %v335 = vld [vmem:[#allocation5 + $0x40] sm:$0xff]
    %v336 = vld [vmem:[#allocation5 + $0x48] sm:$0xff]
    %v337 = vld [vmem:[#allocation5 + $0x50] sm:$0xff]
    %v338 = vld [vmem:[#allocation5 + $0x58] sm:$0xff]
    %v339 = vld [vmem:[#allocation5 + $0x60] sm:$0xff]
    %v340 = vld [vmem:[#allocation5 + $0x68] sm:$0xff]
    %v341 = vld [vmem:[#allocation5 + $0x70] sm:$0xff]
    %v342 = vld [vmem:[#allocation5 + $0x78] sm:$0xff]
    %v343 = vld [vmem:[#allocation5 + $0x80] sm:$0xff]
    %v344 = vld [vmem:[#allocation5 + $0x88] sm:$0xff]
    %v345 = vld [vmem:[#allocation5 + $0x90] sm:$0xff]
    %v346 = vld [vmem:[#allocation5 + $0x98] sm:$0xff]
    %v347 = vld [vmem:[#allocation5 + $0xa0] sm:$0xff]
    %v348 = vld [vmem:[#allocation5 + $0xa8] sm:$0xff]
    %v349 = vld [vmem:[#allocation5 + $0xb0] sm:$0xff]
    %v350 = vld [vmem:[#allocation5 + $0xb8] sm:$0xff]
    %v351 = vld [vmem:[#allocation5 + $0xc0] sm:$0xff]
    %v352 = vld [vmem:[#allocation5 + $0xc8] sm:$0xff]
    %v353 = vld [vmem:[#allocation5 + $0xd0] sm:$0xff]
    %v354 = vld [vmem:[#allocation5 + $0xd8] sm:$0xff]
    %v355 = vld [vmem:[#allocation5 + $0xe0] sm:$0xff]
    %v356 = vld [vmem:[#allocation5 + $0xe8] sm:$0xff]
    %v357 = vld [vmem:[#allocation5 + $0xf0] sm:$0xff]
    %v358 = vld [vmem:[#allocation5 + $0xf8] sm:$0xff]
    %v359 = vld [vmem:[#allocation5 + $0x100] sm:$0xff]
    %v360 = vld [vmem:[#allocation5 + $0x108] sm:$0xff]
    %v361 = vld [vmem:[#allocation5 + $0x110] sm:$0xff]
    %v362 = vld [vmem:[#allocation5 + $0x118] sm:$0xff]
    %v363 = vld [vmem:[#allocation5 + $0x120] sm:$0xff]
    %v364 = vld [vmem:[#allocation5 + $0x128] sm:$0xff]
    %v365 = vld [vmem:[#allocation5 + $0x130] sm:$0xff]
    %v366 = vld [vmem:[#allocation5 + $0x138] sm:$0xff]
    %v367 = vld [vmem:[#allocation5 + $0x140] sm:$0xff]
    %v368 = vld [vmem:[#allocation5 + $0x148] sm:$0xff]
    %v369 = vld [vmem:[#allocation5 + $0x150] sm:$0xff]
    %v370 = vld [vmem:[#allocation5 + $0x158] sm:$0xff]
    %v371 = vld [vmem:[#allocation5 + $0x160] sm:$0xff]
    %v372 = vld [vmem:[#allocation5 + $0x168] sm:$0xff]
    %v373 = vld [vmem:[#allocation5 + $0x170] sm:$0xff]
    %v374 = vld [vmem:[#allocation5 + $0x178] sm:$0xff]
    %v375 = vld [vmem:[#allocation5 + $0x180] sm:$0xff]
    %v376 = vld [vmem:[#allocation5 + $0x188] sm:$0xff]
    %v377 = vld [vmem:[#allocation5 + $0x190] sm:$0xff]
    %v378 = vld [vmem:[#allocation5 + $0x198] sm:$0xff]
    %v379 = vld [vmem:[#allocation5 + $0x1a0] sm:$0xff]
    %v380 = vld [vmem:[#allocation5 + $0x1a8] sm:$0xff]
    %v381 = vld [vmem:[#allocation5 + $0x1b0] sm:$0xff]
    %v382 = vld [vmem:[#allocation5 + $0x1b8] sm:$0xff]
    %v383 = vld [vmem:[#allocation5 + $0x1c0] sm:$0xff]
    %v384 = vld [vmem:[#allocation5 + $0x1c8] sm:$0xff]
    %v385 = vld [vmem:[#allocation5 + $0x1d0] sm:$0xff]
    %v386 = vld [vmem:[#allocation5 + $0x1d8] sm:$0xff]
    %v387 = vld [vmem:[#allocation5 + $0x1e0] sm:$0xff]
    %v388 = vld [vmem:[#allocation5 + $0x1e8] sm:$0xff]
    %v389 = vld [vmem:[#allocation5 + $0x1f0] sm:$0xff]
    %v390 = vld [vmem:[#allocation5 + $0x1f8] sm:$0xff]
    %v391 = vld [vmem:[%s6] sm:$0x3]
    %v393 = vlaneseq
    %v394 = vshrl.u32 %v393, 7
    %v395 = vsub.s32 0, %v394
    %v396 = vrot.slane %v391, %v395
    %v397 = vlaneseq
    %v398 = vshrl.u32 %v397, 7
    %v399 = vsub.s32 1, %v398
    %v400 = vrot.slane %v391, %v399
    %403 = vmatprep.subr.mxu0 %v328
    %404 = vmatpush1.msra.mxu0 %v327
    %405 = vmatprep.subr.mxu0 %v330
    %406 = vmatpush1.msra.mxu0 %v329
    %407 = vmatprep.subr.mxu0 %v332
    %408 = vmatpush1.msra.mxu0 %v331
    %409 = vmatprep.subr.mxu0 %v334
    %410 = vmatpush1.msra.mxu0 %v333
    %411 = vmatprep.subr.mxu0 %v336
    %412 = vmatpush1.msra.mxu0 %v335
    %413 = vmatprep.subr.mxu0 %v338
    %414 = vmatpush1.msra.mxu0 %v337
    %415 = vmatprep.subr.mxu0 %v340
    %416 = vmatpush1.msra.mxu0 %v339
    %417 = vmatprep.subr.mxu0 %v342
    %418 = vmatpush1.msra.mxu0 %v341
    %419 = vmatprep.subr.mxu0 %v344
    %420 = vmatpush1.msra.mxu0 %v343
    %421 = vmatprep.subr.mxu0 %v346
    %422 = vmatpush1.msra.mxu0 %v345
    %423 = vmatprep.subr.mxu0 %v348
    %424 = vmatpush1.msra.mxu0 %v347
    %425 = vmatprep.subr.mxu0 %v350
    %426 = vmatpush1.msra.mxu0 %v349
    %427 = vmatprep.subr.mxu0 %v352
    %428 = vmatpush1.msra.mxu0 %v351
    %429 = vmatprep.subr.mxu0 %v354
    %430 = vmatpush1.msra.mxu0 %v353
    %431 = vmatprep.subr.mxu0 %v356
    %432 = vmatpush1.msra.mxu0 %v355
    %433 = vmatprep.subr.mxu0 %v358
    %434 = vmatpush1.msra.mxu0 %v357
    %435 = vmatprep.subr.mxu0 %v360
    %436 = vmatpush1.msra.mxu0 %v359
    %437 = vmatprep.subr.mxu0 %v362
    %438 = vmatpush1.msra.mxu0 %v361
    %439 = vmatprep.subr.mxu0 %v364
    %440 = vmatpush1.msra.mxu0 %v363
    %441 = vmatprep.subr.mxu0 %v366
    %442 = vmatpush1.msra.mxu0 %v365
    %443 = vmatprep.subr.mxu0 %v368
    %444 = vmatpush1.msra.mxu0 %v367
    %445 = vmatprep.subr.mxu0 %v370
    %446 = vmatpush1.msra.mxu0 %v369
    %447 = vmatprep.subr.mxu0 %v372
    %448 = vmatpush1.msra.mxu0 %v371
    %449 = vmatprep.subr.mxu0 %v374
    %450 = vmatpush1.msra.mxu0 %v373
    %451 = vmatprep.subr.mxu0 %v376
    %452 = vmatpush1.msra.mxu0 %v375
    %453 = vmatprep.subr.mxu0 %v378
    %454 = vmatpush1.msra.mxu0 %v377
    %455 = vmatprep.subr.mxu0 %v380
    %456 = vmatpush1.msra.mxu0 %v379
    %457 = vmatprep.subr.mxu0 %v382
    %458 = vmatpush1.msra.mxu0 %v381
    %459 = vmatprep.subr.mxu0 %v384
    %460 = vmatpush1.msra.mxu0 %v383
    %461 = vmatprep.subr.mxu0 %v386
    %462 = vmatpush1.msra.mxu0 %v385
    %463 = vmatprep.subr.mxu0 %v388
    %464 = vmatpush1.msra.mxu0 %v387
    %465 = vmatprep.subr.mxu0 %v390
    %466 = vmatpush1.msra.mxu0 %v389
    %467 = vmatprep.mubr.f32.mxu0 %v326
    %468 = vmatmul.mubr.f32.gmra.mrb[0].mxu0 %v325
    %v469 = vpop.f32.mrb[0].mxu0
    %v470 = vadd.f32 %v396, %v469
    %v471 = vpop.f32.mrb[0].mxu0
    %v472 = vadd.f32 %v400, %v471
    %473 = vdwg.mxu0
    %v474 = vmax.f32 %v470, 0.0
    %v475 = vmax.f32 %v472, 0.0
    %v476 = vld [vmem:[#allocation7] sm:$0xff]
    %v477 = vld [vmem:[#allocation7 + $0x8] sm:$0xff]
    %v478 = vld [vmem:[#allocation7 + $0x10] sm:$0xff]
    %v479 = vld [vmem:[#allocation7 + $0x18] sm:$0xff]
    %v480 = vld [vmem:[#allocation7 + $0x20] sm:$0xff]
    %v481 = vld [vmem:[#allocation7 + $0x28] sm:$0xff]
    %v482 = vld [vmem:[#allocation7 + $0x30] sm:$0xff]
    %v483 = vld [vmem:[#allocation7 + $0x38] sm:$0xff]
    %v484 = vld [vmem:[#allocation7 + $0x40] sm:$0xff]
    %v485 = vld [vmem:[#allocation7 + $0x48] sm:$0xff]
    %v486 = vld [vmem:[#allocation7 + $0x50] sm:$0xff]
    %v487 = vld [vmem:[#allocation7 + $0x58] sm:$0xff]
    %v488 = vld [vmem:[#allocation7 + $0x60] sm:$0xff]
    %v489 = vld [vmem:[#allocation7 + $0x68] sm:$0xff]
    %v490 = vld [vmem:[#allocation7 + $0x70] sm:$0xff]
    %v491 = vld [vmem:[#allocation7 + $0x78] sm:$0xff]
    %v492 = vld [vmem:[#allocation7 + $0x80] sm:$0xff]
    %v493 = vld [vmem:[#allocation7 + $0x88] sm:$0xff]
    %v494 = vld [vmem:[#allocation7 + $0x90] sm:$0xff]
    %v495 = vld [vmem:[#allocation7 + $0x98] sm:$0xff]
    %v496 = vld [vmem:[#allocation7 + $0xa0] sm:$0xff]
    %v497 = vld [vmem:[#allocation7 + $0xa8] sm:$0xff]
    %v498 = vld [vmem:[#allocation7 + $0xb0] sm:$0xff]
    %v499 = vld [vmem:[#allocation7 + $0xb8] sm:$0xff]
    %v500 = vld [vmem:[#allocation7 + $0xc0] sm:$0xff]
    %v501 = vld [vmem:[#allocation7 + $0xc8] sm:$0xff]
    %v502 = vld [vmem:[#allocation7 + $0xd0] sm:$0xff]
    %v503 = vld [vmem:[#allocation7 + $0xd8] sm:$0xff]
    %v504 = vld [vmem:[#allocation7 + $0xe0] sm:$0xff]
    %v505 = vld [vmem:[#allocation7 + $0xe8] sm:$0xff]
    %v506 = vld [vmem:[#allocation7 + $0xf0] sm:$0xff]
    %v507 = vld [vmem:[#allocation7 + $0xf8] sm:$0xff]
    %v508 = vld [vmem:[#allocation7 + $0x100] sm:$0xff]
    %v509 = vld [vmem:[#allocation7 + $0x108] sm:$0xff]
    %v510 = vld [vmem:[#allocation7 + $0x110] sm:$0xff]
    %v511 = vld [vmem:[#allocation7 + $0x118] sm:$0xff]
    %v512 = vld [vmem:[#allocation7 + $0x120] sm:$0xff]
    %v513 = vld [vmem:[#allocation7 + $0x128] sm:$0xff]
    %v514 = vld [vmem:[#allocation7 + $0x130] sm:$0xff]
    %v515 = vld [vmem:[#allocation7 + $0x138] sm:$0xff]
    %v516 = vld [vmem:[#allocation7 + $0x140] sm:$0xff]
    %v517 = vld [vmem:[#allocation7 + $0x148] sm:$0xff]
    %v518 = vld [vmem:[#allocation7 + $0x150] sm:$0xff]
    %v519 = vld [vmem:[#allocation7 + $0x158] sm:$0xff]
    %v520 = vld [vmem:[#allocation7 + $0x160] sm:$0xff]
    %v521 = vld [vmem:[#allocation7 + $0x168] sm:$0xff]
    %v522 = vld [vmem:[#allocation7 + $0x170] sm:$0xff]
    %v523 = vld [vmem:[#allocation7 + $0x178] sm:$0xff]
    %v524 = vld [vmem:[#allocation7 + $0x180] sm:$0xff]
    %v525 = vld [vmem:[#allocation7 + $0x188] sm:$0xff]
    %v526 = vld [vmem:[#allocation7 + $0x190] sm:$0xff]
    %v527 = vld [vmem:[#allocation7 + $0x198] sm:$0xff]
    %v528 = vld [vmem:[#allocation7 + $0x1a0] sm:$0xff]
    %v529 = vld [vmem:[#allocation7 + $0x1a8] sm:$0xff]
    %v530 = vld [vmem:[#allocation7 + $0x1b0] sm:$0xff]
    %v531 = vld [vmem:[#allocation7 + $0x1b8] sm:$0xff]
    %v532 = vld [vmem:[#allocation7 + $0x1c0] sm:$0xff]
    %v533 = vld [vmem:[#allocation7 + $0x1c8] sm:$0xff]
    %v534 = vld [vmem:[#allocation7 + $0x1d0] sm:$0xff]
    %v535 = vld [vmem:[#allocation7 + $0x1d8] sm:$0xff]
    %v536 = vld [vmem:[#allocation7 + $0x1e0] sm:$0xff]
    %v537 = vld [vmem:[#allocation7 + $0x1e8] sm:$0xff]
    %v538 = vld [vmem:[#allocation7 + $0x1f0] sm:$0xff]
    %v539 = vld [vmem:[#allocation7 + $0x1f8] sm:$0xff]
    %v540 = vld [vmem:[%s8] sm:$0x3]
    %v542 = vlaneseq
    %v543 = vshrl.u32 %v542, 7
    %v544 = vsub.s32 0, %v543
    %v545 = vrot.slane %v540, %v544
    %v546 = vlaneseq
    %v547 = vshrl.u32 %v546, 7
    %v548 = vsub.s32 1, %v547
    %v549 = vrot.slane %v540, %v548
    %552 = vmatprep.subr.mxu0 %v477
    %553 = vmatpush1.msra.mxu0 %v476
    %554 = vmatprep.subr.mxu0 %v479
    %555 = vmatpush1.msra.mxu0 %v478
    %556 = vmatprep.subr.mxu0 %v481
    %557 = vmatpush1.msra.mxu0 %v480
    %558 = vmatprep.subr.mxu0 %v483
    %559 = vmatpush1.msra.mxu0 %v482
    %560 = vmatprep.subr.mxu0 %v485
    %561 = vmatpush1.msra.mxu0 %v484
    %562 = vmatprep.subr.mxu0 %v487
    %563 = vmatpush1.msra.mxu0 %v486
    %564 = vmatprep.subr.mxu0 %v489
    %565 = vmatpush1.msra.mxu0 %v488
    %566 = vmatprep.subr.mxu0 %v491
    %567 = vmatpush1.msra.mxu0 %v490
    %568 = vmatprep.subr.mxu0 %v493
    %569 = vmatpush1.msra.mxu0 %v492
    %570 = vmatprep.subr.mxu0 %v495
    %571 = vmatpush1.msra.mxu0 %v494
    %572 = vmatprep.subr.mxu0 %v497
    %573 = vmatpush1.msra.mxu0 %v496
    %574 = vmatprep.subr.mxu0 %v499
    %575 = vmatpush1.msra.mxu0 %v498
    %576 = vmatprep.subr.mxu0 %v501
    %577 = vmatpush1.msra.mxu0 %v500
    %578 = vmatprep.subr.mxu0 %v503
    %579 = vmatpush1.msra.mxu0 %v502
    %580 = vmatprep.subr.mxu0 %v505
    %581 = vmatpush1.msra.mxu0 %v504
    %582 = vmatprep.subr.mxu0 %v507
    %583 = vmatpush1.msra.mxu0 %v506
    %584 = vmatprep.subr.mxu0 %v509
    %585 = vmatpush1.msra.mxu0 %v508
    %586 = vmatprep.subr.mxu0 %v511
    %587 = vmatpush1.msra.mxu0 %v510
    %588 = vmatprep.subr.mxu0 %v513
    %589 = vmatpush1.msra.mxu0 %v512
    %590 = vmatprep.subr.mxu0 %v515
    %591 = vmatpush1.msra.mxu0 %v514
    %592 = vmatprep.subr.mxu0 %v517
    %593 = vmatpush1.msra.mxu0 %v516
    %594 = vmatprep.subr.mxu0 %v519
    %595 = vmatpush1.msra.mxu0 %v518
    %596 = vmatprep.subr.mxu0 %v521
    %597 = vmatpush1.msra.mxu0 %v520
    %598 = vmatprep.subr.mxu0 %v523
    %599 = vmatpush1.msra.mxu0 %v522
    %600 = vmatprep.subr.mxu0 %v525
    %601 = vmatpush1.msra.mxu0 %v524
    %602 = vmatprep.subr.mxu0 %v527
    %603 = vmatpush1.msra.mxu0 %v526
    %604 = vmatprep.subr.mxu0 %v529
    %605 = vmatpush1.msra.mxu0 %v528
    %606 = vmatprep.subr.mxu0 %v531
    %607 = vmatpush1.msra.mxu0 %v530
    %608 = vmatprep.subr.mxu0 %v533
    %609 = vmatpush1.msra.mxu0 %v532
    %610 = vmatprep.subr.mxu0 %v535
    %611 = vmatpush1.msra.mxu0 %v534
    %612 = vmatprep.subr.mxu0 %v537
    %613 = vmatpush1.msra.mxu0 %v536
    %614 = vmatprep.subr.mxu0 %v539
    %615 = vmatpush1.msra.mxu0 %v538
    %616 = vmatprep.mubr.f32.mxu0 %v475
    %617 = vmatmul.mubr.f32.gmra.mrb[0].mxu0 %v474
    %v618 = vpop.f32.mrb[0].mxu0
    %v619 = vadd.f32 %v545, %v618
    %v620 = vpop.f32.mrb[0].mxu0
    %v621 = vadd.f32 %v549, %v620
    %622 = vdwg.mxu0
    %v623 = vmax.f32 %v619, 0.0
    %v624 = vmax.f32 %v621, 0.0
    %v625 = vld [vmem:[%s9] sm:$0xff]
    %v626 = vld [vmem:[%s9 + $0x8] sm:$0xff]
    %v627 = vld [vmem:[%s9 + $0x10] sm:$0xff]
    %v628 = vld [vmem:[%s9 + $0x18] sm:$0xff]
    %v629 = vld [vmem:[%s9 + $0x20] sm:$0xff]
    %v630 = vld [vmem:[%s9 + $0x28] sm:$0xff]
    %v631 = vld [vmem:[%s9 + $0x30] sm:$0xff]
    %v632 = vld [vmem:[%s9 + $0x38] sm:$0xff]
    %v633 = vld [vmem:[%s9 + $0x40] sm:$0xff]
    %v634 = vld [vmem:[%s9 + $0x48] sm:$0xff]
    %v635 = vld [vmem:[%s9 + $0x50] sm:$0xff]
    %v636 = vld [vmem:[%s9 + $0x58] sm:$0xff]
    %v637 = vld [vmem:[%s9 + $0x60] sm:$0xff]
    %v638 = vld [vmem:[%s9 + $0x68] sm:$0xff]
    %v639 = vld [vmem:[%s9 + $0x70] sm:$0xff]
    %v640 = vld [vmem:[%s9 + $0x78] sm:$0xff]
    %v641 = vld [vmem:[%s9 + $0x80] sm:$0xff]
    %v642 = vld [vmem:[%s9 + $0x88] sm:$0xff]
    %v643 = vld [vmem:[%s9 + $0x90] sm:$0xff]
    %v644 = vld [vmem:[%s9 + $0x98] sm:$0xff]
    %v645 = vld [vmem:[%s9 + $0xa0] sm:$0xff]
    %v646 = vld [vmem:[%s9 + $0xa8] sm:$0xff]
    %v647 = vld [vmem:[%s9 + $0xb0] sm:$0xff]
    %v648 = vld [vmem:[%s9 + $0xb8] sm:$0xff]
    %v649 = vld [vmem:[%s9 + $0xc0] sm:$0xff]
    %v650 = vld [vmem:[%s9 + $0xc8] sm:$0xff]
    %v651 = vld [vmem:[%s9 + $0xd0] sm:$0xff]
    %v652 = vld [vmem:[%s9 + $0xd8] sm:$0xff]
    %v653 = vld [vmem:[%s9 + $0xe0] sm:$0xff]
    %v654 = vld [vmem:[%s9 + $0xe8] sm:$0xff]
    %v655 = vld [vmem:[%s9 + $0xf0] sm:$0xff]
    %v656 = vld [vmem:[%s9 + $0xf8] sm:$0xff]
    %v657 = vld [vmem:[%s10] sm:$0x1]
    %v659 = vlaneseq
    %v660 = vshrl.u32 %v659, 7
    %v661 = vsub.s32 0, %v660
    %v662 = vrot.slane %v657, %v661
    %664 = vmatprep.subr.mxu0 0.0
    %665 = vmatpush1.msra.mxu0 %v625
    %666 = vmatprep.subr.mxu0 0.0
    %667 = vmatpush1.msra.mxu0 %v626
    %668 = vmatprep.subr.mxu0 0.0
    %669 = vmatpush1.msra.mxu0 %v627
    %670 = vmatprep.subr.mxu0 0.0
    %671 = vmatpush1.msra.mxu0 %v628
    %672 = vmatprep.subr.mxu0 0.0
    %673 = vmatpush1.msra.mxu0 %v629
    %674 = vmatprep.subr.mxu0 0.0
    %675 = vmatpush1.msra.mxu0 %v630
    %676 = vmatprep.subr.mxu0 0.0
    %677 = vmatpush1.msra.mxu0 %v631
    %678 = vmatprep.subr.mxu0 0.0
    %679 = vmatpush1.msra.mxu0 %v632
    %680 = vmatprep.subr.mxu0 0.0
    %681 = vmatpush1.msra.mxu0 %v633
    %682 = vmatprep.subr.mxu0 0.0
    %683 = vmatpush1.msra.mxu0 %v634
    %684 = vmatprep.subr.mxu0 0.0
    %685 = vmatpush1.msra.mxu0 %v635
    %686 = vmatprep.subr.mxu0 0.0
    %687 = vmatpush1.msra.mxu0 %v636
    %688 = vmatprep.subr.mxu0 0.0
    %689 = vmatpush1.msra.mxu0 %v637
    %690 = vmatprep.subr.mxu0 0.0
    %691 = vmatpush1.msra.mxu0 %v638
    %692 = vmatprep.subr.mxu0 0.0
    %693 = vmatpush1.msra.mxu0 %v639
    %694 = vmatprep.subr.mxu0 0.0
    %695 = vmatpush1.msra.mxu0 %v640
    %696 = vmatprep.subr.mxu0 0.0
    %697 = vmatpush1.msra.mxu0 %v641
    %698 = vmatprep.subr.mxu0 0.0
    %699 = vmatpush1.msra.mxu0 %v642
    %700 = vmatprep.subr.mxu0 0.0
    %701 = vmatpush1.msra.mxu0 %v643
    %702 = vmatprep.subr.mxu0 0.0
    %703 = vmatpush1.msra.mxu0 %v644
    %704 = vmatprep.subr.mxu0 0.0
    %705 = vmatpush1.msra.mxu0 %v645
    %706 = vmatprep.subr.mxu0 0.0
    %707 = vmatpush1.msra.mxu0 %v646
    %708 = vmatprep.subr.mxu0 0.0
    %709 = vmatpush1.msra.mxu0 %v647
    %710 = vmatprep.subr.mxu0 0.0
    %711 = vmatpush1.msra.mxu0 %v648
    %712 = vmatprep.subr.mxu0 0.0
    %713 = vmatpush1.msra.mxu0 %v649
    %714 = vmatprep.subr.mxu0 0.0
    %715 = vmatpush1.msra.mxu0 %v650
    %716 = vmatprep.subr.mxu0 0.0
    %717 = vmatpush1.msra.mxu0 %v651
    %718 = vmatprep.subr.mxu0 0.0
    %719 = vmatpush1.msra.mxu0 %v652
    %720 = vmatprep.subr.mxu0 0.0
    %721 = vmatpush1.msra.mxu0 %v653
    %722 = vmatprep.subr.mxu0 0.0
    %723 = vmatpush1.msra.mxu0 %v654
    %724 = vmatprep.subr.mxu0 0.0
    %725 = vmatpush1.msra.mxu0 %v655
    %726 = vmatprep.subr.mxu0 0.0
    %727 = vmatpush1.msra.mxu0 %v656
    %728 = vmatprep.mubr.f32.mxu0 %v624
    %729 = vmatmul.mubr.f32.gmra.mrb[0].mxu0 %v623
    %v730 = vpop.f32.mrb[0].mxu0
    %v731 = vadd.f32 %v662, %v730
    %v732 = vpop.f32.mrb[0].mxu0
    %733 = vdwg.mxu0
    %vm734 = vcmask 64512
    %735 = vst.msk [vmem:[#allocation8] sm:$0xff] %vm734, %v731
    // Predicated region
    $region58: #{tpu_custom_call.1} parent=1 // pred_check
      _
    $region59: #{tpu_custom_call.1} parent=1 // pred_check_branch
      %737 = sbr.rel (0) target = $region61
    $region60: #{tpu_custom_call.1} parent=1 // pred_region
      %s739 = ssub.s32 128, 128
      %740 = vsyncadd [#allocation4], %s739
      %s742 = sshll.u32 [#allocation8], 4
      %s743 = int_to_ptr.vmem [resolvable:$true] %s742
      %745 = dma.vmem_to_hbm [thread:$0]  %s743, 128, %s11, [#allocation4]
    $region61: #{tpu_custom_call.1} parent=1 // pred_fallthru
      _
    // Predicated region
    $region62: #{tpu_custom_call.1} parent=1 // pred_check
      _
    $region63: #{tpu_custom_call.1} parent=1 // pred_check_branch
      %747 = sbr.rel (0) target = $region65
    $region64: #{tpu_custom_call.1} parent=1 // pred_region
      %748 = dma.done [#allocation4], 128
    $region65: #{tpu_custom_call.1} parent=1 // pred_fallthru
      _
    %749 = vsyncpa [#allocation3], 1
    %750 = vsyncpa [#allocation6], 1
    %751 = vsyncpa [#allocation4], 1

</llo_original>
